<compile_context>
chip_gen: v7x
topology: tpu7x:2x2x1
jax: 0.10.0
libtpu: 0.0.40
codegen_flags: <defaults>
</compile_context>

<pallas_src>
import jax
import jax.numpy as jnp
from jax.experimental import pallas as pl
from jax.experimental.pallas import tpu as pltpu

LANE = 128
SUBLANE_BF16 = 16  # bf16 packs 16 rows per vreg along the sublane axis


def _round_up(x, m):
    return (x + m - 1) // m * m


def _pad2d(x, rows, cols):
    return jnp.pad(x, ((0, rows - x.shape[0]), (0, cols - x.shape[1])))


def make_mmgecs_kernel(n_levels):
    """Kernel ref order: x_cat, (w_l, b_l) * n_levels, w_clf, b_clf, out.

    Weights are bf16, biases f32; activations bf16 into the MXU, f32 accumulate
    + bias + ReLU on the VPU; f32 output.
    """

    def kernel(*refs):
        it = iter(refs)
        x_ref = next(it)
        layers = [(next(it), next(it)) for _ in range(n_levels)]
        w_clf_ref = next(it)
        b_clf_ref = next(it)
        out_ref = next(it)

        h = x_ref[...]  # bf16, fused (ge | cs) lane layout
        for w_ref, b_ref in layers:
            # Block-diagonal fused layer: one bf16 x bf16 -> f32 MXU pass for
            # BOTH subnets at this depth level.
            acc = jnp.dot(h, w_ref[...], preferred_element_type=jnp.float32)
            acc = jnp.maximum(acc + b_ref[...], 0.0)  # bias + ReLU in f32 (VPU)
            # Dropout: identity (inference semantics).
            h = acc.astype(jnp.bfloat16)

        # h already IS concat([h_ge, h_cs], 1) in the fused lane layout, so the
        # classifier is a single matmul — no in-kernel concatenate copy.
        logits = jnp.dot(h, w_clf_ref[...], preferred_element_type=jnp.float32)
        logits = logits + b_clf_ref[...]
        # sigmoid(x) == 0.5 * (tanh(x / 2) + 1): exact identity, single EUP op.
        out_ref[...] = 0.5 * (jnp.tanh(0.5 * logits) + 1.0)

    return kernel


def mmgecs_forward(x_ge, x_cs, ge_params, cs_params, clf_params, *, batch_tile=512):
    """MMGECSNet forward via one batch-gridded pallas_call with fused subnets."""
    batch = x_ge.shape[0]
    assert x_cs.shape[0] == batch
    w_clf, b_clf = clf_params
    out_dim = w_clf.shape[1]

    n_ge, n_cs = len(ge_params), len(cs_params)
    n_levels = max(n_ge, n_cs)
    if n_ge != n_cs:
        # Identity padding of the shallower subnet is only exact once its
        # activations are post-ReLU (non-negative).
        assert min(n_ge, n_cs) >= 1, (
            "fused layout does not support depth mismatch with an empty subnet")

    # ---- dimension bookkeeping (real + lane-padded) ------------------------
    ge_dims = [x_ge.shape[1]] + [w.shape[1] for w, _ in ge_params]
    cs_dims = [x_cs.shape[1]] + [w.shape[1] for w, _ in cs_params]
    ge_out, cs_out = ge_dims[-1], cs_dims[-1]
    # Extend the shallower subnet with identity levels so both have n_levels.
    ge_dims += [ge_dims[-1]] * (n_levels - n_ge)
    cs_dims += [cs_dims[-1]] * (n_levels - n_cs)
    ge_pdims = [_round_up(d, LANE) for d in ge_dims]
    cs_pdims = [_round_up(d, LANE) for d in cs_dims]
    fused_pdims = [g + c for g, c in zip(ge_pdims, cs_pdims)]
    out_pad = _round_up(out_dim, LANE)

    # ---- batch tiling -------------------------------------------------------
    # Round tiles to 16 rows (bf16 sublane packing) and force grid >= 2 so the
    # "parallel" batch axis can be sharded across v7x's two TensorCores.
    if batch <= batch_tile:
        tb = _round_up(max(1, -(-batch // 2)), SUBLANE_BF16)
        b_pad = max(_round_up(batch, tb), 2 * tb)
    else:
        tb = _round_up(batch_tile, SUBLANE_BF16)
        b_pad = _round_up(batch, tb)
    grid = (b_pad // tb,)

    # ---- fused, padded inputs / parameters (wrapper-side layout plumbing) ---
    x_cat = jnp.concatenate(
        [_pad2d(x_ge, b_pad, ge_pdims[0]), _pad2d(x_cs, b_pad, cs_pdims[0])],
        axis=1,
    ).astype(jnp.bfloat16)

    def real_or_identity(params, dims, level, n_real):
        if level < n_real:
            return params[level]
        d = dims[level]  # identity level: dims[level] == dims[level + 1]
        return jnp.eye(d, dtype=jnp.float32), jnp.zeros((d,), jnp.float32)

    # Block-diagonal fused weights.  Pad rows/cols are exactly zero so padded
    # activation lanes remain zero through every (matmul + bias + ReLU) level.
    param_inputs = []
    for l in range(n_levels):
        w_ge_l, b_ge_l = real_or_identity(ge_params, ge_dims, l, n_ge)
        w_cs_l, b_cs_l = real_or_identity(cs_params, cs_dims, l, n_cs)
        kf, nf = fused_pdims[l], fused_pdims[l + 1]
        w = jnp.zeros((kf, nf), jnp.float32)
        w = w.at[:ge_dims[l], :ge_dims[l + 1]].set(w_ge_l)
        w = w.at[ge_pdims[l]:ge_pdims[l] + cs_dims[l],
                 ge_pdims[l + 1]:ge_pdims[l + 1] + cs_dims[l + 1]].set(w_cs_l)
        b = jnp.zeros((1, nf), jnp.float32)
        b = b.at[0, :ge_dims[l + 1]].set(b_ge_l)
        b = b.at[0, ge_pdims[l + 1]:ge_pdims[l + 1] + cs_dims[l + 1]].set(b_cs_l)
        param_inputs += [w.astype(jnp.bfloat16), b]

    # Fused classifier aligned to the fused (ge | cs) lane layout.
    w_c = jnp.zeros((fused_pdims[-1], out_pad), jnp.float32)
    w_c = w_c.at[:ge_out, :out_dim].set(w_clf[:ge_out, :])
    w_c = w_c.at[ge_pdims[-1]:ge_pdims[-1] + cs_out, :out_dim].set(w_clf[ge_out:, :])
    b_c = _pad2d(b_clf.reshape(1, -1), 1, out_pad).astype(jnp.float32)
    param_inputs += [w_c.astype(jnp.bfloat16), b_c]

    # ---- advisory cost estimate ---------------------------------------------
    flops = sum(2 * b_pad * fused_pdims[l] * fused_pdims[l + 1] for l in range(n_levels))
    flops += 2 * b_pad * fused_pdims[-1] * out_pad
    bytes_accessed = int(x_cat.size) * x_cat.dtype.itemsize
    bytes_accessed += sum(int(a.size) * a.dtype.itemsize for a in param_inputs)
    bytes_accessed += b_pad * out_pad * 4
    cost = pl.CostEstimate(flops=flops, transcendentals=b_pad * out_pad,
                           bytes_accessed=int(bytes_accessed))

    # ---- explicit VMEM budget -----------------------------------------------
    param_bytes = sum(int(a.size) * a.dtype.itemsize for a in param_inputs)
    act_bytes = 2 * tb * fused_pdims[0] * 2        # double-buffered bf16 input tile
    act_bytes += 2 * tb * out_pad * 4              # double-buffered f32 output tile
    work_bytes = 6 * tb * max(fused_pdims + [out_pad]) * 4  # in-kernel f32 temps (rough)
    needed = int((param_bytes + act_bytes + work_bytes) * 1.25) + (4 << 20)
    try:
        vmem_cap = int(pltpu.get_tpu_info().vmem_capacity_bytes)
    except Exception:
        vmem_cap = 64 << 20  # conservative (v7x per-TensorCore VMEM)
    vmem_limit = max(32 << 20, min(needed, int(vmem_cap * 0.9)))

    # ---- pallas_call ----------------------------------------------------------
    kernel = make_mmgecs_kernel(n_levels)
    out_shape = jax.ShapeDtypeStruct((b_pad, out_pad), jnp.float32)
    act_in_spec = pl.BlockSpec((tb, fused_pdims[0]), lambda i: (i, 0))
    out_spec = pl.BlockSpec((tb, out_pad), lambda i: (i, 0))

    def run(single_buffer_params):
        def const_spec(a):
            # Constant index_map -> parameter stays resident across grid steps;
            # single-buffer it to halve its VMEM footprint.
            if single_buffer_params and hasattr(pl, "Buffered"):
                return pl.BlockSpec(a.shape, lambda i: (0, 0),
                                    pipeline_mode=pl.Buffered(1))
            return pl.BlockSpec(a.shape, lambda i: (0, 0))

        in_specs = [act_in_spec] + [const_spec(a) for a in param_inputs]
        call = pl.pallas_call(
            kernel,
            out_shape=out_shape,
            grid=grid,
            in_specs=in_specs,
            out_specs=out_spec,
            compiler_params=pltpu.CompilerParams(
                # Batch tiles are independent -> shard across v7x's 2 TCs.
                dimension_semantics=("parallel",),
                vmem_limit_bytes=vmem_limit,
            ),
            cost_estimate=cost,
        )
        return jax.block_until_ready(call(x_cat, *param_inputs))

    try:
        out_padded = run(True)
    except Exception:
        # Fallback for jax builds that reject pipeline_mode=pl.Buffered(1) on
        # pallas_call BlockSpecs: retry with default double buffering.
        out_padded = run(False)

    return out_padded[:batch, :out_dim]


# --------------------------------------------------------------------------
# Parameter init + pure-JAX reference (f32) for the self-test.
# --------------------------------------------------------------------------
def init_linear(key, fan_in, fan_out):
    """PyTorch-default-style uniform(-1/sqrt(fan_in), 1/sqrt(fan_in)) init."""
    kw, kb = jax.random.split(key)
    bound = 1.0 / jnp.sqrt(float(fan_in))
    w = jax.random.uniform(kw, (fan_in, fan_out), jnp.float32, -bound, bound)
    b = jax.random.uniform(kb, (fan_out,), jnp.float32, -bound, bound)
    return w, b


def init_subnet(key, dim_in, layers):
    params = []
    prev = dim_in
    for h in layers:
        key, sub = jax.random.split(key)
        params.append(init_linear(sub, prev, h))
        prev = h
    return params, prev


def reference_forward(x_ge, x_cs, ge_params, cs_params, clf_params):
    def subnet(x, params):
        h = x
        for w, b in params:
            h = jnp.maximum(h @ w + b, 0.0)
        return h

    h = jnp.concatenate([subnet(x_ge, ge_params), subnet(x_cs, cs_params)], axis=1)
    w_clf, b_clf = clf_params
    return jax.nn.sigmoid(h @ w_clf + b_clf)


if __name__ == "__main__":
    # Small shapes consistent with the module's forward.
    batch = 8
    ge_in, ge_layers = 32, (32, 16)
    cs_in, cs_layers = 24, (32, 16)
    out_dim = 8

    key = jax.random.PRNGKey(0)
    k_xge, k_xcs, k_ge, k_cs, k_clf = jax.random.split(key, 5)

    x_ge = jax.random.normal(k_xge, (batch, ge_in), jnp.float32)
    x_cs = jax.random.normal(k_xcs, (batch, cs_in), jnp.float32)

    ge_params, ge_out = init_subnet(k_ge, ge_in, ge_layers)
    cs_params, cs_out = init_subnet(k_cs, cs_in, cs_layers)
    clf_params = init_linear(k_clf, ge_out + cs_out, out_dim)

    out = mmgecs_forward(x_ge, x_cs, ge_params, cs_params, clf_params)
    out = jax.block_until_ready(out)

    ref = reference_forward(x_ge, x_cs, ge_params, cs_params, clf_params)
    assert out.shape == (batch, out_dim)
    # bf16 MXU operands -> loosened tolerance vs f32 reference.
    assert jnp.allclose(out, ref, atol=2e-2, rtol=2e-2), "mismatch vs reference"

    print("KERNEL_OK")
</pallas_src>

<mosaic_0001>
module attributes {stable_mosaic.version = 11 : i64} {
  func.func @kernel(%arg0: i32, %arg1: memref<16x256xbf16, #tpu.memory_space<vmem>>, %arg2: memref<256x256xbf16, #tpu.memory_space<vmem>>, %arg3: memref<1x256xf32, #tpu.memory_space<vmem>>, %arg4: memref<256x256xbf16, #tpu.memory_space<vmem>>, %arg5: memref<1x256xf32, #tpu.memory_space<vmem>>, %arg6: memref<256x128xbf16, #tpu.memory_space<vmem>>, %arg7: memref<1x128xf32, #tpu.memory_space<vmem>>, %arg8: memref<16x128xf32, #tpu.memory_space<vmem>>) attributes {dimension_semantics = [#tpu.dimension_semantics<parallel>], iteration_bounds = array<i64: 2>, scalar_prefetch = 0 : i64, scratch_operands = 0 : i64, tpu.core_type = #tpu.core_type<tc>, window_params = [{transform_indices = @transform_0, window_bounds = array<i64: 16, 256>}, {pipeline_mode = #tpu.pipeline_mode<synchronous>, transform_indices = @transform_1, window_bounds = array<i64: 256, 256>}, {pipeline_mode = #tpu.pipeline_mode<synchronous>, transform_indices = @transform_2, window_bounds = array<i64: 1, 256>}, {pipeline_mode = #tpu.pipeline_mode<synchronous>, transform_indices = @transform_3, window_bounds = array<i64: 256, 256>}, {pipeline_mode = #tpu.pipeline_mode<synchronous>, transform_indices = @transform_4, window_bounds = array<i64: 1, 256>}, {pipeline_mode = #tpu.pipeline_mode<synchronous>, transform_indices = @transform_5, window_bounds = array<i64: 256, 128>}, {pipeline_mode = #tpu.pipeline_mode<synchronous>, transform_indices = @transform_6, window_bounds = array<i64: 1, 128>}, {transform_indices = @transform_7, window_bounds = array<i64: 16, 128>}]} {
    %c0 = arith.constant 0 : index
    %c0_0 = arith.constant 0 : index
    %0 = vector.load %arg1[%c0, %c0_0] : memref<16x256xbf16, #tpu.memory_space<vmem>>, vector<16x256xbf16>
    %c0_1 = arith.constant 0 : index
    %c0_2 = arith.constant 0 : index
    %1 = vector.load %arg2[%c0_1, %c0_2] : memref<256x256xbf16, #tpu.memory_space<vmem>>, vector<256x256xbf16>
    %cst = arith.constant dense<0.000000e+00> : vector<16x256xf32>
    %2 = tpu.matmul %0, %1, %cst {dimension_numbers = #tpu.dot_dimension_numbers<[1], [0], [0], [1], [0, 0, 1, 1], [], []>} : vector<16x256xbf16>, vector<256x256xbf16>, vector<16x256xf32> -> vector<16x256xf32>
    %c0_3 = arith.constant 0 : index
    %c0_4 = arith.constant 0 : index
    %3 = vector.load %arg3[%c0_3, %c0_4] : memref<1x256xf32, #tpu.memory_space<vmem>>, vector<1x256xf32>
    %4 = vector.broadcast %3 : vector<1x256xf32> to vector<16x256xf32>
    %5 = arith.addf %2, %4 : vector<16x256xf32>
    %cst_5 = arith.constant 0.000000e+00 : f32
    %6 = vector.broadcast %cst_5 : f32 to vector<16x256xf32>
    %7 = arith.maximumf %5, %6 : vector<16x256xf32>
    %8 = arith.truncf %7 : vector<16x256xf32> to vector<16x256xbf16>
    %c0_6 = arith.constant 0 : index
    %c0_7 = arith.constant 0 : index
    %9 = vector.load %arg4[%c0_6, %c0_7] : memref<256x256xbf16, #tpu.memory_space<vmem>>, vector<256x256xbf16>
    %cst_8 = arith.constant dense<0.000000e+00> : vector<16x256xf32>
    %10 = tpu.matmul %8, %9, %cst_8 {dimension_numbers = #tpu.dot_dimension_numbers<[1], [0], [0], [1], [0, 0, 1, 1], [], []>} : vector<16x256xbf16>, vector<256x256xbf16>, vector<16x256xf32> -> vector<16x256xf32>
    %c0_9 = arith.constant 0 : index
    %c0_10 = arith.constant 0 : index
    %11 = vector.load %arg5[%c0_9, %c0_10] : memref<1x256xf32, #tpu.memory_space<vmem>>, vector<1x256xf32>
    %12 = vector.broadcast %11 : vector<1x256xf32> to vector<16x256xf32>
    %13 = arith.addf %10, %12 : vector<16x256xf32>
    %cst_11 = arith.constant 0.000000e+00 : f32
    %14 = vector.broadcast %cst_11 : f32 to vector<16x256xf32>
    %15 = arith.maximumf %13, %14 : vector<16x256xf32>
    %16 = arith.truncf %15 : vector<16x256xf32> to vector<16x256xbf16>
    %c0_12 = arith.constant 0 : index
    %c0_13 = arith.constant 0 : index
    %17 = vector.load %arg6[%c0_12, %c0_13] : memref<256x128xbf16, #tpu.memory_space<vmem>>, vector<256x128xbf16>
    %cst_14 = arith.constant dense<0.000000e+00> : vector<16x128xf32>
    %18 = tpu.matmul %16, %17, %cst_14 {dimension_numbers = #tpu.dot_dimension_numbers<[1], [0], [0], [1], [0, 0, 1, 1], [], []>} : vector<16x256xbf16>, vector<256x128xbf16>, vector<16x128xf32> -> vector<16x128xf32>
    %c0_15 = arith.constant 0 : index
    %c0_16 = arith.constant 0 : index
    %19 = vector.load %arg7[%c0_15, %c0_16] : memref<1x128xf32, #tpu.memory_space<vmem>>, vector<1x128xf32>
    %20 = vector.broadcast %19 : vector<1x128xf32> to vector<16x128xf32>
    %21 = arith.addf %18, %20 : vector<16x128xf32>
    %cst_17 = arith.constant 5.000000e-01 : f32
    %22 = vector.broadcast %cst_17 : f32 to vector<16x128xf32>
    %23 = arith.mulf %22, %21 : vector<16x128xf32>
    %24 = math.tanh %23 : vector<16x128xf32>
    %cst_18 = arith.constant 1.000000e+00 : f32
    %25 = vector.broadcast %cst_18 : f32 to vector<16x128xf32>
    %26 = arith.addf %24, %25 : vector<16x128xf32>
    %cst_19 = arith.constant 5.000000e-01 : f32
    %27 = vector.broadcast %cst_19 : f32 to vector<16x128xf32>
    %28 = arith.mulf %27, %26 : vector<16x128xf32>
    %c0_20 = arith.constant 0 : index
    %c0_21 = arith.constant 0 : index
    %29 = vector.load %arg8[%c0_20, %c0_21] : memref<16x128xf32, #tpu.memory_space<vmem>>, vector<16x128xf32>
    tpu.vector_store %arg8[%c0_20, %c0_21], %28 {strides = array<i32>} : memref<16x128xf32, #tpu.memory_space<vmem>>, vector<16x128xf32>,
    return
  }
  func.func @transform_0(%arg0: i32) -> (i32, i32) {
    %c0_i32 = arith.constant 0 : i32
    %c0_i32_0 = arith.constant 0 : i32
    return %arg0, %c0_i32 : i32, i32
  }
  func.func @transform_1(%arg0: i32) -> (i32, i32) {
    %c0_i32 = arith.constant 0 : i32
    %c0_i32_0 = arith.constant 0 : i32
    %c0_i32_1 = arith.constant 0 : i32
    return %c0_i32, %c0_i32_0 : i32, i32
  }
  func.func @transform_2(%arg0: i32) -> (i32, i32) {
    %c0_i32 = arith.constant 0 : i32
    %c0_i32_0 = arith.constant 0 : i32
    %c0_i32_1 = arith.constant 0 : i32
    return %c0_i32, %c0_i32_0 : i32, i32
  }
  func.func @transform_3(%arg0: i32) -> (i32, i32) {
    %c0_i32 = arith.constant 0 : i32
    %c0_i32_0 = arith.constant 0 : i32
    %c0_i32_1 = arith.constant 0 : i32
    return %c0_i32, %c0_i32_0 : i32, i32
  }
  func.func @transform_4(%arg0: i32) -> (i32, i32) {
    %c0_i32 = arith.constant 0 : i32
    %c0_i32_0 = arith.constant 0 : i32
    %c0_i32_1 = arith.constant 0 : i32
    return %c0_i32, %c0_i32_0 : i32, i32
  }
  func.func @transform_5(%arg0: i32) -> (i32, i32) {
    %c0_i32 = arith.constant 0 : i32
    %c0_i32_0 = arith.constant 0 : i32
    %c0_i32_1 = arith.constant 0 : i32
    return %c0_i32, %c0_i32_0 : i32, i32
  }
  func.func @transform_6(%arg0: i32) -> (i32, i32) {
    %c0_i32 = arith.constant 0 : i32
    %c0_i32_0 = arith.constant 0 : i32
    %c0_i32_1 = arith.constant 0 : i32
    return %c0_i32, %c0_i32_0 : i32, i32
  }
  func.func @transform_7(%arg0: i32) -> (i32, i32) {
    %c0_i32 = arith.constant 0 : i32
    %c0_i32_0 = arith.constant 0 : i32
    return %arg0, %c0_i32 : i32, i32
  }
}

module attributes {stable_mosaic.version = 11 : i64} {
  func.func @kernel(%arg0: i32, %arg1: memref<16x256xbf16, #tpu.memory_space<vmem>>, %arg2: memref<256x256xbf16, #tpu.memory_space<vmem>>, %arg3: memref<1x256xf32, #tpu.memory_space<vmem>>, %arg4: memref<256x256xbf16, #tpu.memory_space<vmem>>, %arg5: memref<1x256xf32, #tpu.memory_space<vmem>>, %arg6: memref<256x128xbf16, #tpu.memory_space<vmem>>, %arg7: memref<1x128xf32, #tpu.memory_space<vmem>>, %arg8: memref<16x128xf32, #tpu.memory_space<vmem>>) attributes {dimension_semantics = [#tpu.dimension_semantics<parallel>], iteration_bounds = array<i64: 2>, scalar_prefetch = 0 : i64, scratch_operands = 0 : i64, tpu.core_type = #tpu.core_type<tc>, window_params = [{transform_indices = @transform_0, window_bounds = array<i64: 16, 256>}, {pipeline_mode = #tpu.pipeline_mode<synchronous>, transform_indices = @transform_1, window_bounds = array<i64: 256, 256>}, {pipeline_mode = #tpu.pipeline_mode<synchronous>, transform_indices = @transform_2, window_bounds = array<i64: 1, 256>}, {pipeline_mode = #tpu.pipeline_mode<synchronous>, transform_indices = @transform_3, window_bounds = array<i64: 256, 256>}, {pipeline_mode = #tpu.pipeline_mode<synchronous>, transform_indices = @transform_4, window_bounds = array<i64: 1, 256>}, {pipeline_mode = #tpu.pipeline_mode<synchronous>, transform_indices = @transform_5, window_bounds = array<i64: 256, 128>}, {pipeline_mode = #tpu.pipeline_mode<synchronous>, transform_indices = @transform_6, window_bounds = array<i64: 1, 128>}, {transform_indices = @transform_7, window_bounds = array<i64: 16, 128>}]} {
    %c0 = arith.constant 0 : index
    %c0_0 = arith.constant 0 : index
    %0 = vector.load %arg1[%c0, %c0_0] : memref<16x256xbf16, #tpu.memory_space<vmem>>, vector<16x256xbf16>
    %c0_1 = arith.constant 0 : index
    %c0_2 = arith.constant 0 : index
    %1 = vector.load %arg2[%c0_1, %c0_2] : memref<256x256xbf16, #tpu.memory_space<vmem>>, vector<256x256xbf16>
    %cst = arith.constant dense<0.000000e+00> : vector<16x256xf32>
    %2 = tpu.matmul %0, %1, %cst {dimension_numbers = #tpu.dot_dimension_numbers<[1], [0], [0], [1], [0, 0, 1, 1], [], []>} : vector<16x256xbf16>, vector<256x256xbf16>, vector<16x256xf32> -> vector<16x256xf32>
    %c0_3 = arith.constant 0 : index
    %c0_4 = arith.constant 0 : index
    %3 = vector.load %arg3[%c0_3, %c0_4] : memref<1x256xf32, #tpu.memory_space<vmem>>, vector<1x256xf32>
    %4 = vector.broadcast %3 : vector<1x256xf32> to vector<16x256xf32>
    %5 = arith.addf %2, %4 : vector<16x256xf32>
    %cst_5 = arith.constant 0.000000e+00 : f32
    %6 = vector.broadcast %cst_5 : f32 to vector<16x256xf32>
    %7 = arith.maximumf %5, %6 : vector<16x256xf32>
    %8 = arith.truncf %7 : vector<16x256xf32> to vector<16x256xbf16>
    %c0_6 = arith.constant 0 : index
    %c0_7 = arith.constant 0 : index
    %9 = vector.load %arg4[%c0_6, %c0_7] : memref<256x256xbf16, #tpu.memory_space<vmem>>, vector<256x256xbf16>
    %cst_8 = arith.constant dense<0.000000e+00> : vector<16x256xf32>
    %10 = tpu.matmul %8, %9, %cst_8 {dimension_numbers = #tpu.dot_dimension_numbers<[1], [0], [0], [1], [0, 0, 1, 1], [], []>} : vector<16x256xbf16>, vector<256x256xbf16>, vector<16x256xf32> -> vector<16x256xf32>
    %c0_9 = arith.constant 0 : index
    %c0_10 = arith.constant 0 : index
    %11 = vector.load %arg5[%c0_9, %c0_10] : memref<1x256xf32, #tpu.memory_space<vmem>>, vector<1x256xf32>
    %12 = vector.broadcast %11 : vector<1x256xf32> to vector<16x256xf32>
    %13 = arith.addf %10, %12 : vector<16x256xf32>
    %cst_11 = arith.constant 0.000000e+00 : f32
    %14 = vector.broadcast %cst_11 : f32 to vector<16x256xf32>
    %15 = arith.maximumf %13, %14 : vector<16x256xf32>
    %16 = arith.truncf %15 : vector<16x256xf32> to vector<16x256xbf16>
    %c0_12 = arith.constant 0 : index
    %c0_13 = arith.constant 0 : index
    %17 = vector.load %arg6[%c0_12, %c0_13] : memref<256x128xbf16, #tpu.memory_space<vmem>>, vector<256x128xbf16>
    %cst_14 = arith.constant dense<0.000000e+00> : vector<16x128xf32>
    %18 = tpu.matmul %16, %17, %cst_14 {dimension_numbers = #tpu.dot_dimension_numbers<[1], [0], [0], [1], [0, 0, 1, 1], [], []>} : vector<16x256xbf16>, vector<256x128xbf16>, vector<16x128xf32> -> vector<16x128xf32>
    %c0_15 = arith.constant 0 : index
    %c0_16 = arith.constant 0 : index
    %19 = vector.load %arg7[%c0_15, %c0_16] : memref<1x128xf32, #tpu.memory_space<vmem>>, vector<1x128xf32>
    %20 = vector.broadcast %19 : vector<1x128xf32> to vector<16x128xf32>
    %21 = arith.addf %18, %20 : vector<16x128xf32>
    %cst_17 = arith.constant 5.000000e-01 : f32
    %22 = vector.broadcast %cst_17 : f32 to vector<16x128xf32>
    %23 = arith.mulf %22, %21 : vector<16x128xf32>
    %24 = math.tanh %23 : vector<16x128xf32>
    %cst_18 = arith.constant 1.000000e+00 : f32
    %25 = vector.broadcast %cst_18 : f32 to vector<16x128xf32>
    %26 = arith.addf %24, %25 : vector<16x128xf32>
    %cst_19 = arith.constant 5.000000e-01 : f32
    %27 = vector.broadcast %cst_19 : f32 to vector<16x128xf32>
    %28 = arith.mulf %27, %26 : vector<16x128xf32>
    %c0_20 = arith.constant 0 : index
    %c0_21 = arith.constant 0 : index
    %29 = vector.load %arg8[%c0_20, %c0_21] : memref<16x128xf32, #tpu.memory_space<vmem>>, vector<16x128xf32>
    tpu.vector_store %arg8[%c0_20, %c0_21], %28 {strides = array<i32>} : memref<16x128xf32, #tpu.memory_space<vmem>>, vector<16x128xf32>,
    return
  }
  func.func @transform_0(%arg0: i32) -> (i32, i32) {
    %c0_i32 = arith.constant 0 : i32
    %c0_i32_0 = arith.constant 0 : i32
    return %arg0, %c0_i32 : i32, i32
  }
  func.func @transform_1(%arg0: i32) -> (i32, i32) {
    %c0_i32 = arith.constant 0 : i32
    %c0_i32_0 = arith.constant 0 : i32
    %c0_i32_1 = arith.constant 0 : i32
    return %c0_i32, %c0_i32_0 : i32, i32
  }
  func.func @transform_2(%arg0: i32) -> (i32, i32) {
    %c0_i32 = arith.constant 0 : i32
    %c0_i32_0 = arith.constant 0 : i32
    %c0_i32_1 = arith.constant 0 : i32
    return %c0_i32, %c0_i32_0 : i32, i32
  }
  func.func @transform_3(%arg0: i32) -> (i32, i32) {
    %c0_i32 = arith.constant 0 : i32
    %c0_i32_0 = arith.constant 0 : i32
    %c0_i32_1 = arith.constant 0 : i32
    return %c0_i32, %c0_i32_0 : i32, i32
  }
  func.func @transform_4(%arg0: i32) -> (i32, i32) {
    %c0_i32 = arith.constant 0 : i32
    %c0_i32_0 = arith.constant 0 : i32
    %c0_i32_1 = arith.constant 0 : i32
    return %c0_i32, %c0_i32_0 : i32, i32
  }
  func.func @transform_5(%arg0: i32) -> (i32, i32) {
    %c0_i32 = arith.constant 0 : i32
    %c0_i32_0 = arith.constant 0 : i32
    %c0_i32_1 = arith.constant 0 : i32
    return %c0_i32, %c0_i32_0 : i32, i32
  }
  func.func @transform_6(%arg0: i32) -> (i32, i32) {
    %c0_i32 = arith.constant 0 : i32
    %c0_i32_0 = arith.constant 0 : i32
    %c0_i32_1 = arith.constant 0 : i32
    return %c0_i32, %c0_i32_0 : i32, i32
  }
  func.func @transform_7(%arg0: i32) -> (i32, i32) {
    %c0_i32 = arith.constant 0 : i32
    %c0_i32_0 = arith.constant 0 : i32
    return %arg0, %c0_i32 : i32, i32
  }
}

</mosaic_0001>

<llo_original>
// kernel: tpu_custom_call.1
$region0: #{tpu_custom_call.1}
  #allocation0 [shape = 'u32[]', space=smem, size = 0x4, offset = 0x4, fixed_abs, tag = 'smem constant byte address 0x4 - core index']
  #allocation1 [shape = 'u32[144,128]{1,0:T(1,128)}', space=vmem, size = 0x12000, scoped, tag = 'internal scratch']
  %s0 = inlined_call_operand.hbm [shape: bf16[32,256], index: 0, kind: input, shape index: {}]
  %s1 = inlined_call_operand.hbm [shape: bf16[256,256], index: 1, kind: input, shape index: {}]
  %s2 = inlined_call_operand.vmem [shape: f32[1,256], index: 2, kind: input, shape index: {}]
  %s3 = inlined_call_operand.hbm [shape: bf16[256,256], index: 3, kind: input, shape index: {}]
  %s4 = inlined_call_operand.vmem [shape: f32[1,256], index: 4, kind: input, shape index: {}]
  %s5 = inlined_call_operand.hbm [shape: bf16[256,128], index: 5, kind: input, shape index: {}]
  %s6 = inlined_call_operand.vmem [shape: f32[1,128], index: 6, kind: input, shape index: {}]
  %s7 = inlined_call_operand.hbm [shape: f32[32,128], index: 7, kind: output, shape index: {}]
  %s8 = sld [smem:[#allocation0]]
  $region77: #{tpu_custom_call.1} parent=0
    _
  %s10 = ssub.s32 1, %s8
  %s11 = scalar_select 0, %s10, %s8
  $region1: #{tpu_custom_call.1} parent=0
    #allocation2 [shape = 'u8[16384]{0}', space=vmem, size = 0x4000, scoped, tag = 'input window, operand 0']
    #allocation3 [shape = 's32[2]{0}', space=sflag, size = 0x8, scoped, tag = 'scoped memory for tpu_custom_call.1']
    #allocation4 [shape = 's32[2]{0}', space=sflag, size = 0x8, scoped, tag = 'scoped memory for tpu_custom_call.1']
    #allocation5 [shape = 'u8[131072]{0}', space=vmem, size = 0x20000, scoped, tag = 'input window, operand 1, single buffered']
    #allocation6 [shape = 's32[1]{0}', space=sflag, size = 0x4, scoped, tag = 'scoped memory for tpu_custom_call.1']
    #allocation7 [shape = 'u8[131072]{0}', space=vmem, size = 0x20000, scoped, tag = 'input window, operand 3, single buffered']
    #allocation8 [shape = 'u8[65536]{0}', space=vmem, size = 0x10000, scoped, tag = 'input window, operand 5, single buffered']
    #allocation9 [shape = 's32[1]{0}', space=sflag, size = 0x4, scoped, tag = 'scoped memory for tpu_custom_call.1']
    #allocation10 [shape = 'u8[16384]{0}', space=vmem, size = 0x4000, scoped, tag = 'output window, operand 0']
    %12 = vsyncpa [#allocation3], 0
    %s13 = scalar_lea.sflag [#allocation3], 1
    %14 = vsyncpa %s13, 0
    %15 = vsyncpa [#allocation6], 0
    %16 = vsyncpa [#allocation9], 0
    %17 = vsyncpa [#allocation4], 0
    %s18 = scalar_lea.sflag [#allocation4], 1
    %19 = vsyncpa %s18, 0
    loop: start=0, step=1, limit=4
    $region2: #{tpu_custom_call.1} parent=1 // loop_pre_header
      _
    $region3: #{tpu_custom_call.1} parent=1 // loop_header
      %s21 = sphi 0, %s25
      %p22 = scmp.ge.s32.totalorder %s21, 4
      %s31 = sphi 0, %s33
      %s34 = sphi 0, %s31
      %s35 = sphi 0, %s34
      %s51 = sphi 0, %s35
      %s55 = sphi 0, %s55
      %s57 = sphi 0, %s55
      %s58 = sphi 0, %s57
      %s72 = sphi 0, %s58
      %s76 = sphi 0, %s76
      %s78 = sphi 0, %s76
      %s79 = sphi 0, %s78
      %s93 = sphi 0, %s79
      %s97 = sphi 0, %s97
      %s99 = sphi 0, %s97
      %s100 = sphi 0, %s99
      %s114 = sphi 0, %s100
      %s118 = sphi 0, %s118
      %s120 = sphi 0, %s118
      %s121 = sphi 0, %s120
      %s135 = sphi 0, %s121
      %s139 = sphi 0, %s139
      %s141 = sphi 0, %s139
      %s142 = sphi 0, %s141
      %s156 = sphi 0, %s142
      %s160 = sphi 0, %s160
      %s162 = sphi 0, %s160
      %s163 = sphi 0, %s162
      %s177 = sphi 0, %s163
      %s183 = sphi 0, %s185
      %s186 = sphi 0, %s183
      %s187 = sphi 0, %s186
      %s203 = sphi 0, %s187
    $region4: #{tpu_custom_call.1} parent=1 // loop_header_branch
      %24 = sbr.rel (%p22) target = $region8
    $region5: #{tpu_custom_call.1} parent=1 // loop_body
      %s26 = ssub.s32 %s21, 1
      %s27 = ssub.s32 %s21, 2
      %s28 = sadd.s32 %s21, 1
      %s29 = ssub.s32 %s21, %s28
      %p30 = scmp.eq.s32.totalorder %s29, 0
      %s32 = sadd.s32 %s31, 1
      %s33 = scalar_select %p30, %s31, %s32
      %p36 = pneg %p30
      %p37 = scmp.eq.s32.totalorder %s21, 1
      %p38 = por %p36, %p37
      %p39 = scmp.ne.s32.totalorder %s31, %s34
      %p40 = scmp.eq.s32.totalorder %s21, 0
      %p41 = por %p39, %p40
      %p42 = scmp.ne.s32.totalorder %s31, %s34
      %p43 = scmp.eq.s32.totalorder %s26, 1
      %p44 = por %p42, %p43
      %p45 = scmp.ne.s32.totalorder %s34, %s35
      %p46 = scmp.eq.s32.totalorder %s26, 0
      %p47 = por %p45, %p46
      %p48 = scmp.ne.s32.totalorder %s34, %s35
      %p49 = scmp.eq.s32.totalorder %s27, 1
      %p50 = por %p48, %p49
      %p52 = scmp.ne.s32.totalorder %s35, %s51
      %p53 = scmp.eq.s32.totalorder %s27, 0
      %p54 = por %p52, %p53
      %s56 = sadd.s32 %s55, 1
      %p59 = scmp.eq.s32.totalorder %s21, 1
      %p60 = scmp.ne.s32.totalorder %s55, %s57
      %p61 = scmp.eq.s32.totalorder %s21, 0
      %p62 = por %p60, %p61
      %p63 = scmp.ne.s32.totalorder %s55, %s57
      %p64 = scmp.eq.s32.totalorder %s26, 1
      %p65 = por %p63, %p64
      %p66 = scmp.ne.s32.totalorder %s57, %s58
      %p67 = scmp.eq.s32.totalorder %s26, 0
      %p68 = por %p66, %p67
      %p69 = scmp.ne.s32.totalorder %s57, %s58
      %p70 = scmp.eq.s32.totalorder %s27, 1
      %p71 = por %p69, %p70
      %p73 = scmp.ne.s32.totalorder %s58, %s72
      %p74 = scmp.eq.s32.totalorder %s27, 0
      %p75 = por %p73, %p74
      %s77 = sadd.s32 %s76, 1
      %p80 = scmp.eq.s32.totalorder %s21, 1
      %p81 = scmp.ne.s32.totalorder %s76, %s78
      %p82 = scmp.eq.s32.totalorder %s21, 0
      %p83 = por %p81, %p82
      %p84 = scmp.ne.s32.totalorder %s76, %s78
      %p85 = scmp.eq.s32.totalorder %s26, 1
      %p86 = por %p84, %p85
      %p87 = scmp.ne.s32.totalorder %s78, %s79
      %p88 = scmp.eq.s32.totalorder %s26, 0
      %p89 = por %p87, %p88
      %p90 = scmp.ne.s32.totalorder %s78, %s79
      %p91 = scmp.eq.s32.totalorder %s27, 1
      %p92 = por %p90, %p91
      %p94 = scmp.ne.s32.totalorder %s79, %s93
      %p95 = scmp.eq.s32.totalorder %s27, 0
      %p96 = por %p94, %p95
      %s98 = sadd.s32 %s97, 1
      %p101 = scmp.eq.s32.totalorder %s21, 1
      %p102 = scmp.ne.s32.totalorder %s97, %s99
      %p103 = scmp.eq.s32.totalorder %s21, 0
      %p104 = por %p102, %p103
      %p105 = scmp.ne.s32.totalorder %s97, %s99
      %p106 = scmp.eq.s32.totalorder %s26, 1
      %p107 = por %p105, %p106
      %p108 = scmp.ne.s32.totalorder %s99, %s100
      %p109 = scmp.eq.s32.totalorder %s26, 0
      %p110 = por %p108, %p109
      %p111 = scmp.ne.s32.totalorder %s99, %s100
      %p112 = scmp.eq.s32.totalorder %s27, 1
      %p113 = por %p111, %p112
      %p115 = scmp.ne.s32.totalorder %s100, %s114
      %p116 = scmp.eq.s32.totalorder %s27, 0
      %p117 = por %p115, %p116
      %s119 = sadd.s32 %s118, 1
      %p122 = scmp.eq.s32.totalorder %s21, 1
      %p123 = scmp.ne.s32.totalorder %s118, %s120
      %p124 = scmp.eq.s32.totalorder %s21, 0
      %p125 = por %p123, %p124
      %p126 = scmp.ne.s32.totalorder %s118, %s120
      %p127 = scmp.eq.s32.totalorder %s26, 1
      %p128 = por %p126, %p127
      %p129 = scmp.ne.s32.totalorder %s120, %s121
      %p130 = scmp.eq.s32.totalorder %s26, 0
      %p131 = por %p129, %p130
      %p132 = scmp.ne.s32.totalorder %s120, %s121
      %p133 = scmp.eq.s32.totalorder %s27, 1
      %p134 = por %p132, %p133
      %p136 = scmp.ne.s32.totalorder %s121, %s135
      %p137 = scmp.eq.s32.totalorder %s27, 0
      %p138 = por %p136, %p137
      %s140 = sadd.s32 %s139, 1
      %p143 = scmp.eq.s32.totalorder %s21, 1
      %p144 = scmp.ne.s32.totalorder %s139, %s141
      %p145 = scmp.eq.s32.totalorder %s21, 0
      %p146 = por %p144, %p145
      %p147 = scmp.ne.s32.totalorder %s139, %s141
      %p148 = scmp.eq.s32.totalorder %s26, 1
      %p149 = por %p147, %p148
      %p150 = scmp.ne.s32.totalorder %s141, %s142
      %p151 = scmp.eq.s32.totalorder %s26, 0
      %p152 = por %p150, %p151
      %p153 = scmp.ne.s32.totalorder %s141, %s142
      %p154 = scmp.eq.s32.totalorder %s27, 1
      %p155 = por %p153, %p154
      %p157 = scmp.ne.s32.totalorder %s142, %s156
      %p158 = scmp.eq.s32.totalorder %s27, 0
      %p159 = por %p157, %p158
      %s161 = sadd.s32 %s160, 1
      %p164 = scmp.eq.s32.totalorder %s21, 1
      %p165 = scmp.ne.s32.totalorder %s160, %s162
      %p166 = scmp.eq.s32.totalorder %s21, 0
      %p167 = por %p165, %p166
      %p168 = scmp.ne.s32.totalorder %s160, %s162
      %p169 = scmp.eq.s32.totalorder %s26, 1
      %p170 = por %p168, %p169
      %p171 = scmp.ne.s32.totalorder %s162, %s163
      %p172 = scmp.eq.s32.totalorder %s26, 0
      %p173 = por %p171, %p172
      %p174 = scmp.ne.s32.totalorder %s162, %s163
      %p175 = scmp.eq.s32.totalorder %s27, 1
      %p176 = por %p174, %p175
      %p178 = scmp.ne.s32.totalorder %s163, %s177
      %p179 = scmp.eq.s32.totalorder %s27, 0
      %p180 = por %p178, %p179
      %s181 = ssub.s32 %s21, %s28
      %p182 = scmp.eq.s32.totalorder %s181, 0
      %s184 = sadd.s32 %s183, 1
      %s185 = scalar_select %p182, %s183, %s184
      %p188 = pneg %p182
      %p189 = scmp.eq.s32.totalorder %s21, 1
      %p190 = por %p188, %p189
      %p191 = scmp.ne.s32.totalorder %s183, %s186
      %p192 = scmp.eq.s32.totalorder %s21, 0
      %p193 = por %p191, %p192
      %p194 = scmp.ne.s32.totalorder %s183, %s186
      %p195 = scmp.eq.s32.totalorder %s26, 1
      %p196 = por %p194, %p195
      %p197 = scmp.ne.s32.totalorder %s186, %s187
      %p198 = scmp.eq.s32.totalorder %s26, 0
      %p199 = por %p197, %p198
      %p200 = scmp.ne.s32.totalorder %s186, %s187
      %p201 = scmp.eq.s32.totalorder %s27, 1
      %p202 = por %p200, %p201
      %p204 = scmp.ne.s32.totalorder %s187, %s203
      %p205 = scmp.eq.s32.totalorder %s27, 0
      %p206 = por %p204, %p205
      %p207 = scmp.le.s32.totalorder 1, %s21
      %p208 = scmp.lt.s32.totalorder %s21, 3
      %p209 = pnand %p207, %p208
      %p210 = pneg %p209
      // Predicated region
      $region9: #{tpu_custom_call.1} parent=5 // pred_check
        _
      $region10: #{tpu_custom_call.1} parent=5 // pred_check_branch
        %212 = sbr.rel (%p209) target = $region12
      $region11: #{tpu_custom_call.1} parent=5 // pred_region
        %s213 = ssub.s32 %s21, 1
        // Predicated region
        $region13: #{tpu_custom_call.1} parent=11 // pred_check
          %p214 = pneg %p68
        $region14: #{tpu_custom_call.1} parent=11 // pred_check_branch
          %216 = sbr.rel (%p214) target = $region16
        $region15: #{tpu_custom_call.1} parent=11 // pred_region
          %s218 = ssub.s32 4096, 4096
          %219 = vsyncadd [#allocation6], %s218
          %s220 = sshll.u32 [#allocation5], 4
          %s221 = int_to_ptr.vmem [resolvable:$true] %s220
          %226 = dma.hbm_to_vmem [thread:$0]  %s1, 4096, %s221, [#allocation6], 128, 128, 8
        $region16: #{tpu_custom_call.1} parent=11 // pred_fallthru
          _
        // Predicated region
        $region17: #{tpu_custom_call.1} parent=11 // pred_check
          %p227 = pneg %p89
        $region18: #{tpu_custom_call.1} parent=11 // pred_check_branch
          %229 = sbr.rel (%p227) target = $region20
        $region19: #{tpu_custom_call.1} parent=11 // pred_region
          _
        $region20: #{tpu_custom_call.1} parent=11 // pred_fallthru
          _
        // Predicated region
        $region21: #{tpu_custom_call.1} parent=11 // pred_check
          %p230 = pneg %p110
        $region22: #{tpu_custom_call.1} parent=11 // pred_check_branch
          %232 = sbr.rel (%p230) target = $region24
        $region23: #{tpu_custom_call.1} parent=11 // pred_region
          %s234 = ssub.s32 4096, 4096
          %235 = vsyncadd [#allocation6], %s234
          %s236 = sshll.u32 [#allocation7], 4
          %s237 = int_to_ptr.vmem [resolvable:$true] %s236
          %242 = dma.hbm_to_vmem [thread:$0]  %s3, 4096, %s237, [#allocation6], 128, 128, 8
        $region24: #{tpu_custom_call.1} parent=11 // pred_fallthru
          _
        // Predicated region
        $region25: #{tpu_custom_call.1} parent=11 // pred_check
          %p243 = pneg %p131
        $region26: #{tpu_custom_call.1} parent=11 // pred_check_branch
          %245 = sbr.rel (%p243) target = $region28
        $region27: #{tpu_custom_call.1} parent=11 // pred_region
          _
        $region28: #{tpu_custom_call.1} parent=11 // pred_fallthru
          _
        // Predicated region
        $region29: #{tpu_custom_call.1} parent=11 // pred_check
          %p246 = pneg %p152
        $region30: #{tpu_custom_call.1} parent=11 // pred_check_branch
          %248 = sbr.rel (%p246) target = $region32
        $region31: #{tpu_custom_call.1} parent=11 // pred_region
          %s250 = ssub.s32 2048, 2048
          %251 = vsyncadd [#allocation9], %s250
          %s252 = sshll.u32 [#allocation8], 4
          %s253 = int_to_ptr.vmem [resolvable:$true] %s252
          %258 = dma.hbm_to_vmem [thread:$0]  %s5, 2048, %s253, [#allocation9], 64, 64, 4
        $region32: #{tpu_custom_call.1} parent=11 // pred_fallthru
          _
        // Predicated region
        $region33: #{tpu_custom_call.1} parent=11 // pred_check
          %p259 = pneg %p173
        $region34: #{tpu_custom_call.1} parent=11 // pred_check_branch
          %261 = sbr.rel (%p259) target = $region36
        $region35: #{tpu_custom_call.1} parent=11 // pred_region
          _
        $region36: #{tpu_custom_call.1} parent=11 // pred_fallthru
          _
      $region12: #{tpu_custom_call.1} parent=5 // pred_fallthru
        _
      %p262 = scmp.lt.s32.totalorder %s21, 2
      // Predicated region
      $region37: #{tpu_custom_call.1} parent=5 // pred_check
        %p263 = pneg %p262
      $region38: #{tpu_custom_call.1} parent=5 // pred_check_branch
        %265 = sbr.rel (%p263) target = $region40
      $region39: #{tpu_custom_call.1} parent=5 // pred_region
        // Predicated region
        $region41: #{tpu_custom_call.1} parent=39 // pred_check
          %p266 = pneg %p41
        $region42: #{tpu_custom_call.1} parent=39 // pred_check_branch
          %268 = sbr.rel (%p266) target = $region44
        $region43: #{tpu_custom_call.1} parent=39 // pred_region
          %s269 = sand.u32 %s31, 1
          %s270 = scalar_lea.sflag [#allocation3], %s269
          %s271 = sand.u32 %s31, 1
          %s272 = smul.addr %s271, 16
          %s273 = scalar_lea.vmem [#allocation2], %s272
          %s274 = smul.u32 2, %s21
          %s276 = ssub.s32 256, 256
          %277 = vsyncadd %s270, %s276
          %s278 = smul.addr %s274, 2
          %s279 = smul.addr %s278, 64
          %s280 = scalar_lea.hbm %s0, %s279
          %s281 = sshll.u32 %s273, 4
          %s282 = int_to_ptr.vmem [resolvable:$true] %s281
          %287 = dma.hbm_to_vmem [thread:$0]  %s280, 256, %s282, %s270, 128, 128, 8
        $region44: #{tpu_custom_call.1} parent=39 // pred_fallthru
          _
      $region40: #{tpu_custom_call.1} parent=5 // pred_fallthru
        _
      %p288 = scmp.le.s32.totalorder 1, %s21
      %p289 = scmp.lt.s32.totalorder %s21, 3
      %p290 = pnand %p288, %p289
      %p291 = pneg %p290
      // Predicated region
      $region45: #{tpu_custom_call.1} parent=5 // pred_check
        _
      $region46: #{tpu_custom_call.1} parent=5 // pred_check_branch
        %293 = sbr.rel (%p290) target = $region48
      $region47: #{tpu_custom_call.1} parent=5 // pred_region
        %s294 = ssub.s32 %s21, 1
        %s295 = sand.u32 %s34, 1
        %s296 = scalar_lea.sflag [#allocation3], %s295
        %s297 = sand.u32 %s34, 1
        %s298 = smul.addr %s297, 16
        %s299 = scalar_lea.vmem [#allocation2], %s298
        // Predicated region
        $region49: #{tpu_custom_call.1} parent=47 // pred_check
          %p300 = pneg %p47
        $region50: #{tpu_custom_call.1} parent=47 // pred_check_branch
          %302 = sbr.rel (%p300) target = $region52
        $region51: #{tpu_custom_call.1} parent=47 // pred_region
          %303 = dma.done %s296, 256
        $region52: #{tpu_custom_call.1} parent=47 // pred_fallthru
          _
        // Predicated region
        $region53: #{tpu_custom_call.1} parent=47 // pred_check
          %p304 = pneg %p68
        $region54: #{tpu_custom_call.1} parent=47 // pred_check_branch
          %306 = sbr.rel (%p304) target = $region56
        $region55: #{tpu_custom_call.1} parent=47 // pred_region
          %307 = dma.done [#allocation6], 4096
        $region56: #{tpu_custom_call.1} parent=47 // pred_fallthru
          _
        // Predicated region
        $region57: #{tpu_custom_call.1} parent=47 // pred_check
          %p308 = pneg %p110
        $region58: #{tpu_custom_call.1} parent=47 // pred_check_branch
          %310 = sbr.rel (%p308) target = $region60
        $region59: #{tpu_custom_call.1} parent=47 // pred_region
          %311 = dma.done [#allocation6], 4096
        $region60: #{tpu_custom_call.1} parent=47 // pred_fallthru
          _
        // Predicated region
        $region61: #{tpu_custom_call.1} parent=47 // pred_check
          %p312 = pneg %p152
        $region62: #{tpu_custom_call.1} parent=47 // pred_check_branch
          %314 = sbr.rel (%p312) target = $region64
        $region63: #{tpu_custom_call.1} parent=47 // pred_region
          %315 = dma.done [#allocation9], 2048
        $region64: #{tpu_custom_call.1} parent=47 // pred_fallthru
          _
        %s316 = sand.u32 %s34, 1
        %s317 = scalar_lea.sflag [#allocation3], %s316
        %s318 = sand.u32 %s34, 1
        %s319 = smul.addr %s318, 16
        %s320 = scalar_lea.vmem [#allocation2], %s319
        %p321 = pneg %p47
        %p322 = pneg %p44
        %p323 = pneg %p68
        %p324 = pneg %p65
        %p325 = pneg %p89
        %p326 = pneg %p86
        %p327 = pneg %p110
        %p328 = pneg %p107
        %p329 = pneg %p131
        %p330 = pneg %p128
        %p331 = pneg %p152
        %p332 = pneg %p149
        %p333 = pneg %p173
        %p334 = pneg %p170
        %p335 = pneg %p199
        %p336 = pneg %p196
        %s337 = sand.u32 %s186, 1
        %s338 = scalar_lea.sflag [#allocation4], %s337
        %s339 = sand.u32 %s186, 1
        %s340 = smul.addr %s339, 16
        %s341 = scalar_lea.vmem [#allocation10], %s340
        %s342 = smul.u32 2, %s26
        %s343 = smul.u32 2, %s26
        %v345 = vld [vmem:[%s299] sm:$0xff]
        %v346 = vld [vmem:[%s299 + $0x8] sm:$0xff]
        %v347 = vld [vmem:[#allocation5] sm:$0xff]
        %v348 = vld [vmem:[#allocation5 + $0x8] sm:$0xff]
        %v349 = vld [vmem:[#allocation5 + $0x10] sm:$0xff]
        %v350 = vld [vmem:[#allocation5 + $0x18] sm:$0xff]
        %v351 = vld [vmem:[#allocation5 + $0x20] sm:$0xff]
        %v352 = vld [vmem:[#allocation5 + $0x28] sm:$0xff]
        %v353 = vld [vmem:[#allocation5 + $0x30] sm:$0xff]
        %v354 = vld [vmem:[#allocation5 + $0x38] sm:$0xff]
        %v355 = vld [vmem:[#allocation5 + $0x40] sm:$0xff]
        %v356 = vld [vmem:[#allocation5 + $0x48] sm:$0xff]
        %v357 = vld [vmem:[#allocation5 + $0x50] sm:$0xff]
        %v358 = vld [vmem:[#allocation5 + $0x58] sm:$0xff]
        %v359 = vld [vmem:[#allocation5 + $0x60] sm:$0xff]
        %v360 = vld [vmem:[#allocation5 + $0x68] sm:$0xff]
        %v361 = vld [vmem:[#allocation5 + $0x70] sm:$0xff]
        %v362 = vld [vmem:[#allocation5 + $0x78] sm:$0xff]
        %v363 = vld [vmem:[#allocation5 + $0x80] sm:$0xff]
        %v364 = vld [vmem:[#allocation5 + $0x88] sm:$0xff]
        %v365 = vld [vmem:[#allocation5 + $0x90] sm:$0xff]
        %v366 = vld [vmem:[#allocation5 + $0x98] sm:$0xff]
        %v367 = vld [vmem:[#allocation5 + $0xa0] sm:$0xff]
        %v368 = vld [vmem:[#allocation5 + $0xa8] sm:$0xff]
        %v369 = vld [vmem:[#allocation5 + $0xb0] sm:$0xff]
        %v370 = vld [vmem:[#allocation5 + $0xb8] sm:$0xff]
        %v371 = vld [vmem:[#allocation5 + $0xc0] sm:$0xff]
        %v372 = vld [vmem:[#allocation5 + $0xc8] sm:$0xff]
        %v373 = vld [vmem:[#allocation5 + $0xd0] sm:$0xff]
        %v374 = vld [vmem:[#allocation5 + $0xd8] sm:$0xff]
        %v375 = vld [vmem:[#allocation5 + $0xe0] sm:$0xff]
        %v376 = vld [vmem:[#allocation5 + $0xe8] sm:$0xff]
        %v377 = vld [vmem:[#allocation5 + $0xf0] sm:$0xff]
        %v378 = vld [vmem:[#allocation5 + $0xf8] sm:$0xff]
        %v379 = vld [vmem:[%s2] sm:$0x3]
        %v381 = vlaneseq
        %v382 = vshrl.u32 %v381, 7
        %v383 = vsub.s32 0, %v382
        %v384 = vrot.slane %v379, %v383
        %v385 = vlaneseq
        %v386 = vshrl.u32 %v385, 7
        %v387 = vsub.s32 1, %v386
        %v388 = vrot.slane %v379, %v387
        %v393 = vunpack.c.l.b16 %v345
        %v394 = vunpack.c.h.b16 %v345
        %v395 = vunpack.c.l.b16 %v346
        %v396 = vunpack.c.h.b16 %v346
        %v397 = vpack.c.b16 %v395, %v393
        %v398 = vpack.c.b16 %v396, %v394
        %v433 = vunpack.c.l.b16 %v347
        %v434 = vunpack.c.h.b16 %v347
        %v435 = vunpack.c.l.b16 %v348
        %v436 = vunpack.c.h.b16 %v348
        %v437 = vunpack.c.l.b16 %v349
        %v438 = vunpack.c.h.b16 %v349
        %v439 = vunpack.c.l.b16 %v350
        %v440 = vunpack.c.h.b16 %v350
        %v441 = vunpack.c.l.b16 %v351
        %v442 = vunpack.c.h.b16 %v351
        %v443 = vunpack.c.l.b16 %v352
        %v444 = vunpack.c.h.b16 %v352
        %v445 = vunpack.c.l.b16 %v353
        %v446 = vunpack.c.h.b16 %v353
        %v447 = vunpack.c.l.b16 %v354
        %v448 = vunpack.c.h.b16 %v354
        %v449 = vunpack.c.l.b16 %v355
        %v450 = vunpack.c.h.b16 %v355
        %v451 = vunpack.c.l.b16 %v356
        %v452 = vunpack.c.h.b16 %v356
        %v453 = vunpack.c.l.b16 %v357
        %v454 = vunpack.c.h.b16 %v357
        %v455 = vunpack.c.l.b16 %v358
        %v456 = vunpack.c.h.b16 %v358
        %v457 = vunpack.c.l.b16 %v359
        %v458 = vunpack.c.h.b16 %v359
        %v459 = vunpack.c.l.b16 %v360
        %v460 = vunpack.c.h.b16 %v360
        %v461 = vunpack.c.l.b16 %v361
        %v462 = vunpack.c.h.b16 %v361
        %v463 = vunpack.c.l.b16 %v362
        %v464 = vunpack.c.h.b16 %v362
        %v465 = vunpack.c.l.b16 %v363
        %v466 = vunpack.c.h.b16 %v363
        %v467 = vunpack.c.l.b16 %v364
        %v468 = vunpack.c.h.b16 %v364
        %v469 = vunpack.c.l.b16 %v365
        %v470 = vunpack.c.h.b16 %v365
        %v471 = vunpack.c.l.b16 %v366
        %v472 = vunpack.c.h.b16 %v366
        %v473 = vunpack.c.l.b16 %v367
        %v474 = vunpack.c.h.b16 %v367
        %v475 = vunpack.c.l.b16 %v368
        %v476 = vunpack.c.h.b16 %v368
        %v477 = vunpack.c.l.b16 %v369
        %v478 = vunpack.c.h.b16 %v369
        %v479 = vunpack.c.l.b16 %v370
        %v480 = vunpack.c.h.b16 %v370
        %v481 = vunpack.c.l.b16 %v371
        %v482 = vunpack.c.h.b16 %v371
        %v483 = vunpack.c.l.b16 %v372
        %v484 = vunpack.c.h.b16 %v372
        %v485 = vunpack.c.l.b16 %v373
        %v486 = vunpack.c.h.b16 %v373
        %v487 = vunpack.c.l.b16 %v374
        %v488 = vunpack.c.h.b16 %v374
        %v489 = vunpack.c.l.b16 %v375
        %v490 = vunpack.c.h.b16 %v375
        %v491 = vunpack.c.l.b16 %v376
        %v492 = vunpack.c.h.b16 %v376
        %v493 = vunpack.c.l.b16 %v377
        %v494 = vunpack.c.h.b16 %v377
        %v495 = vunpack.c.l.b16 %v378
        %v496 = vunpack.c.h.b16 %v378
        %v497 = vpack.c.b16 %v435, %v433
        %v498 = vpack.c.b16 %v436, %v434
        %v499 = vpack.c.b16 %v439, %v437
        %v500 = vpack.c.b16 %v440, %v438
        %v501 = vpack.c.b16 %v443, %v441
        %v502 = vpack.c.b16 %v444, %v442
        %v503 = vpack.c.b16 %v447, %v445
        %v504 = vpack.c.b16 %v448, %v446
        %v505 = vpack.c.b16 %v451, %v449
        %v506 = vpack.c.b16 %v452, %v450
        %v507 = vpack.c.b16 %v455, %v453
        %v508 = vpack.c.b16 %v456, %v454
        %v509 = vpack.c.b16 %v459, %v457
        %v510 = vpack.c.b16 %v460, %v458
        %v511 = vpack.c.b16 %v463, %v461
        %v512 = vpack.c.b16 %v464, %v462
        %v513 = vpack.c.b16 %v467, %v465
        %v514 = vpack.c.b16 %v468, %v466
        %v515 = vpack.c.b16 %v471, %v469
        %v516 = vpack.c.b16 %v472, %v470
        %v517 = vpack.c.b16 %v475, %v473
        %v518 = vpack.c.b16 %v476, %v474
        %v519 = vpack.c.b16 %v479, %v477
        %v520 = vpack.c.b16 %v480, %v478
        %v521 = vpack.c.b16 %v483, %v481
        %v522 = vpack.c.b16 %v484, %v482
        %v523 = vpack.c.b16 %v487, %v485
        %v524 = vpack.c.b16 %v488, %v486
        %v525 = vpack.c.b16 %v491, %v489
        %v526 = vpack.c.b16 %v492, %v490
        %v527 = vpack.c.b16 %v495, %v493
        %v528 = vpack.c.b16 %v496, %v494
        %561 = vmatprep.subr.bf16.mxu0 %v498
        %562 = vmatpush1.bf16.msra.mxu0 %v497
        %563 = vmatprep.subr.bf16.mxu0 %v500
        %564 = vmatpush1.bf16.msra.mxu0 %v499
        %565 = vmatprep.subr.bf16.mxu0 %v502
        %566 = vmatpush1.bf16.msra.mxu0 %v501
        %567 = vmatprep.subr.bf16.mxu0 %v504
        %568 = vmatpush1.bf16.msra.mxu0 %v503
        %569 = vmatprep.subr.bf16.mxu0 %v506
        %570 = vmatpush1.bf16.msra.mxu0 %v505
        %571 = vmatprep.subr.bf16.mxu0 %v508
        %572 = vmatpush1.bf16.msra.mxu0 %v507
        %573 = vmatprep.subr.bf16.mxu0 %v510
        %574 = vmatpush1.bf16.msra.mxu0 %v509
        %575 = vmatprep.subr.bf16.mxu0 %v512
        %576 = vmatpush1.bf16.msra.mxu0 %v511
        %577 = vmatprep.subr.bf16.mxu0 %v514
        %578 = vmatpush1.bf16.msra.mxu0 %v513
        %579 = vmatprep.subr.bf16.mxu0 %v516
        %580 = vmatpush1.bf16.msra.mxu0 %v515
        %581 = vmatprep.subr.bf16.mxu0 %v518
        %582 = vmatpush1.bf16.msra.mxu0 %v517
        %583 = vmatprep.subr.bf16.mxu0 %v520
        %584 = vmatpush1.bf16.msra.mxu0 %v519
        %585 = vmatprep.subr.bf16.mxu0 %v522
        %586 = vmatpush1.bf16.msra.mxu0 %v521
        %587 = vmatprep.subr.bf16.mxu0 %v524
        %588 = vmatpush1.bf16.msra.mxu0 %v523
        %589 = vmatprep.subr.bf16.mxu0 %v526
        %590 = vmatpush1.bf16.msra.mxu0 %v525
        %591 = vmatprep.subr.bf16.mxu0 %v528
        %592 = vmatpush1.bf16.msra.mxu0 %v527
        %593 = vmatprep.mubr.bf16.mxu0 %v398
        %594 = vmatmul.mubr.bf16.gmra.mrb[0].mxu0 %v397
        %v595 = vpop.f32.mrb[0].mxu0
        %v596 = vadd.f32 %v384, %v595
        %v597 = vpop.f32.mrb[0].mxu0
        %v598 = vadd.f32 %v388, %v597
        %v599 = vpop.f32.mrb[0].mxu0
        %v600 = vadd.f32 %v384, %v599
        %v601 = vpop.f32.mrb[0].mxu0
        %v602 = vadd.f32 %v388, %v601
        %603 = vdwg.mxu0
        %v604 = vmax.f32 %v596, 0.0
        %v605 = vmax.f32 %v598, 0.0
        %v606 = vmax.f32 %v600, 0.0
        %v607 = vmax.f32 %v602, 0.0
        %v608 = vpack.c.bf16 %v606, %v604
        %v609 = vpack.c.bf16 %v607, %v605
        %v610 = vld [vmem:[#allocation7] sm:$0xff]
        %v611 = vld [vmem:[#allocation7 + $0x8] sm:$0xff]
        %v612 = vld [vmem:[#allocation7 + $0x10] sm:$0xff]
        %v613 = vld [vmem:[#allocation7 + $0x18] sm:$0xff]
        %v614 = vld [vmem:[#allocation7 + $0x20] sm:$0xff]
        %v615 = vld [vmem:[#allocation7 + $0x28] sm:$0xff]
        %v616 = vld [vmem:[#allocation7 + $0x30] sm:$0xff]
        %v617 = vld [vmem:[#allocation7 + $0x38] sm:$0xff]
        %v618 = vld [vmem:[#allocation7 + $0x40] sm:$0xff]
        %v619 = vld [vmem:[#allocation7 + $0x48] sm:$0xff]
        %v620 = vld [vmem:[#allocation7 + $0x50] sm:$0xff]
        %v621 = vld [vmem:[#allocation7 + $0x58] sm:$0xff]
        %v622 = vld [vmem:[#allocation7 + $0x60] sm:$0xff]
        %v623 = vld [vmem:[#allocation7 + $0x68] sm:$0xff]
        %v624 = vld [vmem:[#allocation7 + $0x70] sm:$0xff]
        %v625 = vld [vmem:[#allocation7 + $0x78] sm:$0xff]
        %v626 = vld [vmem:[#allocation7 + $0x80] sm:$0xff]
        %v627 = vld [vmem:[#allocation7 + $0x88] sm:$0xff]
        %v628 = vld [vmem:[#allocation7 + $0x90] sm:$0xff]
        %v629 = vld [vmem:[#allocation7 + $0x98] sm:$0xff]
        %v630 = vld [vmem:[#allocation7 + $0xa0] sm:$0xff]
        %v631 = vld [vmem:[#allocation7 + $0xa8] sm:$0xff]
        %v632 = vld [vmem:[#allocation7 + $0xb0] sm:$0xff]
        %v633 = vld [vmem:[#allocation7 + $0xb8] sm:$0xff]
        %v634 = vld [vmem:[#allocation7 + $0xc0] sm:$0xff]
        %v635 = vld [vmem:[#allocation7 + $0xc8] sm:$0xff]
        %v636 = vld [vmem:[#allocation7 + $0xd0] sm:$0xff]
        %v637 = vld [vmem:[#allocation7 + $0xd8] sm:$0xff]
        %v638 = vld [vmem:[#allocation7 + $0xe0] sm:$0xff]
        %v639 = vld [vmem:[#allocation7 + $0xe8] sm:$0xff]
        %v640 = vld [vmem:[#allocation7 + $0xf0] sm:$0xff]
        %v641 = vld [vmem:[#allocation7 + $0xf8] sm:$0xff]
        %v642 = vld [vmem:[%s4] sm:$0x3]
        %v644 = vlaneseq
        %v645 = vshrl.u32 %v644, 7
        %v646 = vsub.s32 0, %v645
        %v647 = vrot.slane %v642, %v646
        %v648 = vlaneseq
        %v649 = vshrl.u32 %v648, 7
        %v650 = vsub.s32 1, %v649
        %v651 = vrot.slane %v642, %v650
        %v686 = vunpack.c.l.b16 %v610
        %v687 = vunpack.c.h.b16 %v610
        %v688 = vunpack.c.l.b16 %v611
        %v689 = vunpack.c.h.b16 %v611
        %v690 = vunpack.c.l.b16 %v612
        %v691 = vunpack.c.h.b16 %v612
        %v692 = vunpack.c.l.b16 %v613
        %v693 = vunpack.c.h.b16 %v613
        %v694 = vunpack.c.l.b16 %v614
        %v695 = vunpack.c.h.b16 %v614
        %v696 = vunpack.c.l.b16 %v615
        %v697 = vunpack.c.h.b16 %v615
        %v698 = vunpack.c.l.b16 %v616
        %v699 = vunpack.c.h.b16 %v616
        %v700 = vunpack.c.l.b16 %v617
        %v701 = vunpack.c.h.b16 %v617
        %v702 = vunpack.c.l.b16 %v618
        %v703 = vunpack.c.h.b16 %v618
        %v704 = vunpack.c.l.b16 %v619
        %v705 = vunpack.c.h.b16 %v619
        %v706 = vunpack.c.l.b16 %v620
        %v707 = vunpack.c.h.b16 %v620
        %v708 = vunpack.c.l.b16 %v621
        %v709 = vunpack.c.h.b16 %v621
        %v710 = vunpack.c.l.b16 %v622
        %v711 = vunpack.c.h.b16 %v622
        %v712 = vunpack.c.l.b16 %v623
        %v713 = vunpack.c.h.b16 %v623
        %v714 = vunpack.c.l.b16 %v624
        %v715 = vunpack.c.h.b16 %v624
        %v716 = vunpack.c.l.b16 %v625
        %v717 = vunpack.c.h.b16 %v625
        %v718 = vunpack.c.l.b16 %v626
        %v719 = vunpack.c.h.b16 %v626
        %v720 = vunpack.c.l.b16 %v627
        %v721 = vunpack.c.h.b16 %v627
        %v722 = vunpack.c.l.b16 %v628
        %v723 = vunpack.c.h.b16 %v628
        %v724 = vunpack.c.l.b16 %v629
        %v725 = vunpack.c.h.b16 %v629
        %v726 = vunpack.c.l.b16 %v630
        %v727 = vunpack.c.h.b16 %v630
        %v728 = vunpack.c.l.b16 %v631
        %v729 = vunpack.c.h.b16 %v631
        %v730 = vunpack.c.l.b16 %v632
        %v731 = vunpack.c.h.b16 %v632
        %v732 = vunpack.c.l.b16 %v633
        %v733 = vunpack.c.h.b16 %v633
        %v734 = vunpack.c.l.b16 %v634
        %v735 = vunpack.c.h.b16 %v634
        %v736 = vunpack.c.l.b16 %v635
        %v737 = vunpack.c.h.b16 %v635
        %v738 = vunpack.c.l.b16 %v636
        %v739 = vunpack.c.h.b16 %v636
        %v740 = vunpack.c.l.b16 %v637
        %v741 = vunpack.c.h.b16 %v637
        %v742 = vunpack.c.l.b16 %v638
        %v743 = vunpack.c.h.b16 %v638
        %v744 = vunpack.c.l.b16 %v639
        %v745 = vunpack.c.h.b16 %v639
        %v746 = vunpack.c.l.b16 %v640
        %v747 = vunpack.c.h.b16 %v640
        %v748 = vunpack.c.l.b16 %v641
        %v749 = vunpack.c.h.b16 %v641
        %v750 = vpack.c.b16 %v688, %v686
        %v751 = vpack.c.b16 %v689, %v687
        %v752 = vpack.c.b16 %v692, %v690
        %v753 = vpack.c.b16 %v693, %v691
        %v754 = vpack.c.b16 %v696, %v694
        %v755 = vpack.c.b16 %v697, %v695
        %v756 = vpack.c.b16 %v700, %v698
        %v757 = vpack.c.b16 %v701, %v699
        %v758 = vpack.c.b16 %v704, %v702
        %v759 = vpack.c.b16 %v705, %v703
        %v760 = vpack.c.b16 %v708, %v706
        %v761 = vpack.c.b16 %v709, %v707
        %v762 = vpack.c.b16 %v712, %v710
        %v763 = vpack.c.b16 %v713, %v711
        %v764 = vpack.c.b16 %v716, %v714
        %v765 = vpack.c.b16 %v717, %v715
        %v766 = vpack.c.b16 %v720, %v718
        %v767 = vpack.c.b16 %v721, %v719
        %v768 = vpack.c.b16 %v724, %v722
        %v769 = vpack.c.b16 %v725, %v723
        %v770 = vpack.c.b16 %v728, %v726
        %v771 = vpack.c.b16 %v729, %v727
        %v772 = vpack.c.b16 %v732, %v730
        %v773 = vpack.c.b16 %v733, %v731
        %v774 = vpack.c.b16 %v736, %v734
        %v775 = vpack.c.b16 %v737, %v735
        %v776 = vpack.c.b16 %v740, %v738
        %v777 = vpack.c.b16 %v741, %v739
        %v778 = vpack.c.b16 %v744, %v742
        %v779 = vpack.c.b16 %v745, %v743
        %v780 = vpack.c.b16 %v748, %v746
        %v781 = vpack.c.b16 %v749, %v747
        %814 = vmatprep.subr.bf16.mxu0 %v751
        %815 = vmatpush1.bf16.msra.mxu0 %v750
        %816 = vmatprep.subr.bf16.mxu0 %v753
        %817 = vmatpush1.bf16.msra.mxu0 %v752
        %818 = vmatprep.subr.bf16.mxu0 %v755
        %819 = vmatpush1.bf16.msra.mxu0 %v754
        %820 = vmatprep.subr.bf16.mxu0 %v757
        %821 = vmatpush1.bf16.msra.mxu0 %v756
        %822 = vmatprep.subr.bf16.mxu0 %v759
        %823 = vmatpush1.bf16.msra.mxu0 %v758
        %824 = vmatprep.subr.bf16.mxu0 %v761
        %825 = vmatpush1.bf16.msra.mxu0 %v760
        %826 = vmatprep.subr.bf16.mxu0 %v763
        %827 = vmatpush1.bf16.msra.mxu0 %v762
        %828 = vmatprep.subr.bf16.mxu0 %v765
        %829 = vmatpush1.bf16.msra.mxu0 %v764
        %830 = vmatprep.subr.bf16.mxu0 %v767
        %831 = vmatpush1.bf16.msra.mxu0 %v766
        %832 = vmatprep.subr.bf16.mxu0 %v769
        %833 = vmatpush1.bf16.msra.mxu0 %v768
        %834 = vmatprep.subr.bf16.mxu0 %v771
        %835 = vmatpush1.bf16.msra.mxu0 %v770
        %836 = vmatprep.subr.bf16.mxu0 %v773
        %837 = vmatpush1.bf16.msra.mxu0 %v772
        %838 = vmatprep.subr.bf16.mxu0 %v775
        %839 = vmatpush1.bf16.msra.mxu0 %v774
        %840 = vmatprep.subr.bf16.mxu0 %v777
        %841 = vmatpush1.bf16.msra.mxu0 %v776
        %842 = vmatprep.subr.bf16.mxu0 %v779
        %843 = vmatpush1.bf16.msra.mxu0 %v778
        %844 = vmatprep.subr.bf16.mxu0 %v781
        %845 = vmatpush1.bf16.msra.mxu0 %v780
        %846 = vmatprep.mubr.bf16.mxu0 %v609
        %847 = vmatmul.mubr.bf16.gmra.mrb[0].mxu0 %v608
        %v848 = vpop.f32.mrb[0].mxu0
        %v849 = vadd.f32 %v647, %v848
        %v850 = vpop.f32.mrb[0].mxu0
        %v851 = vadd.f32 %v651, %v850
        %v852 = vpop.f32.mrb[0].mxu0
        %v853 = vadd.f32 %v647, %v852
        %v854 = vpop.f32.mrb[0].mxu0
        %v855 = vadd.f32 %v651, %v854
        %856 = vdwg.mxu0
        %v857 = vmax.f32 %v849, 0.0
        %v858 = vmax.f32 %v851, 0.0
        %v859 = vmax.f32 %v853, 0.0
        %v860 = vmax.f32 %v855, 0.0
        %v861 = vpack.c.bf16 %v859, %v857
        %v862 = vpack.c.bf16 %v860, %v858
        %v863 = vld [vmem:[#allocation8] sm:$0xf]
        %v864 = vld [vmem:[#allocation8 + $0x4] sm:$0xf]
        %v865 = vld [vmem:[#allocation8 + $0x8] sm:$0xf]
        %v866 = vld [vmem:[#allocation8 + $0xc] sm:$0xf]
        %v867 = vld [vmem:[#allocation8 + $0x10] sm:$0xf]
        %v868 = vld [vmem:[#allocation8 + $0x14] sm:$0xf]
        %v869 = vld [vmem:[#allocation8 + $0x18] sm:$0xf]
        %v870 = vld [vmem:[#allocation8 + $0x1c] sm:$0xf]
        %v871 = vld [vmem:[#allocation8 + $0x20] sm:$0xf]
        %v872 = vld [vmem:[#allocation8 + $0x24] sm:$0xf]
        %v873 = vld [vmem:[#allocation8 + $0x28] sm:$0xf]
        %v874 = vld [vmem:[#allocation8 + $0x2c] sm:$0xf]
        %v875 = vld [vmem:[#allocation8 + $0x30] sm:$0xf]
        %v876 = vld [vmem:[#allocation8 + $0x34] sm:$0xf]
        %v877 = vld [vmem:[#allocation8 + $0x38] sm:$0xf]
        %v878 = vld [vmem:[#allocation8 + $0x3c] sm:$0xf]
        %v879 = vld [vmem:[#allocation8 + $0x40] sm:$0xf]
        %v880 = vld [vmem:[#allocation8 + $0x44] sm:$0xf]
        %v881 = vld [vmem:[#allocation8 + $0x48] sm:$0xf]
        %v882 = vld [vmem:[#allocation8 + $0x4c] sm:$0xf]
        %v883 = vld [vmem:[#allocation8 + $0x50] sm:$0xf]
        %v884 = vld [vmem:[#allocation8 + $0x54] sm:$0xf]
        %v885 = vld [vmem:[#allocation8 + $0x58] sm:$0xf]
        %v886 = vld [vmem:[#allocation8 + $0x5c] sm:$0xf]
        %v887 = vld [vmem:[#allocation8 + $0x60] sm:$0xf]
        %v888 = vld [vmem:[#allocation8 + $0x64] sm:$0xf]
        %v889 = vld [vmem:[#allocation8 + $0x68] sm:$0xf]
        %v890 = vld [vmem:[#allocation8 + $0x6c] sm:$0xf]
        %v891 = vld [vmem:[#allocation8 + $0x70] sm:$0xf]
        %v892 = vld [vmem:[#allocation8 + $0x74] sm:$0xf]
        %v893 = vld [vmem:[#allocation8 + $0x78] sm:$0xf]
        %v894 = vld [vmem:[#allocation8 + $0x7c] sm:$0xf]
        %v895 = vld [vmem:[%s6] sm:$0x1]
        %v897 = vlaneseq
        %v898 = vshrl.u32 %v897, 7
        %v899 = vsub.s32 0, %v898
        %v900 = vrot.slane %v895, %v899
        %v934 = vunpack.c.l.b16 %v863
        %v935 = vunpack.c.l.b16 %v864
        %v936 = vunpack.c.l.b16 %v865
        %v937 = vunpack.c.l.b16 %v866
        %v938 = vunpack.c.l.b16 %v867
        %v939 = vunpack.c.l.b16 %v868
        %v940 = vunpack.c.l.b16 %v869
        %v941 = vunpack.c.l.b16 %v870
        %v942 = vunpack.c.l.b16 %v871
        %v943 = vunpack.c.l.b16 %v872
        %v944 = vunpack.c.l.b16 %v873
        %v945 = vunpack.c.l.b16 %v874
        %v946 = vunpack.c.l.b16 %v875
        %v947 = vunpack.c.l.b16 %v876
        %v948 = vunpack.c.l.b16 %v877
        %v949 = vunpack.c.l.b16 %v878
        %v950 = vunpack.c.l.b16 %v879
        %v951 = vunpack.c.l.b16 %v880
        %v952 = vunpack.c.l.b16 %v881
        %v953 = vunpack.c.l.b16 %v882
        %v954 = vunpack.c.l.b16 %v883
        %v955 = vunpack.c.l.b16 %v884
        %v956 = vunpack.c.l.b16 %v885
        %v957 = vunpack.c.l.b16 %v886
        %v958 = vunpack.c.l.b16 %v887
        %v959 = vunpack.c.l.b16 %v888
        %v960 = vunpack.c.l.b16 %v889
        %v961 = vunpack.c.l.b16 %v890
        %v962 = vunpack.c.l.b16 %v891
        %v963 = vunpack.c.l.b16 %v892
        %v964 = vunpack.c.l.b16 %v893
        %v965 = vunpack.c.l.b16 %v894
        %v966 = vpack.c.b16 %v935, %v934
        %v967 = vpack.c.b16 %v937, %v936
        %v968 = vpack.c.b16 %v939, %v938
        %v969 = vpack.c.b16 %v941, %v940
        %v970 = vpack.c.b16 %v943, %v942
        %v971 = vpack.c.b16 %v945, %v944
        %v972 = vpack.c.b16 %v947, %v946
        %v973 = vpack.c.b16 %v949, %v948
        %v974 = vpack.c.b16 %v951, %v950
        %v975 = vpack.c.b16 %v953, %v952
        %v976 = vpack.c.b16 %v955, %v954
        %v977 = vpack.c.b16 %v957, %v956
        %v978 = vpack.c.b16 %v959, %v958
        %v979 = vpack.c.b16 %v961, %v960
        %v980 = vpack.c.b16 %v963, %v962
        %v981 = vpack.c.b16 %v965, %v964
        %998 = vmatprep.subr.bf16.mxu0 0
        %999 = vmatpush1.bf16.msra.mxu0 %v966
        %1000 = vmatprep.subr.bf16.mxu0 0
        %1001 = vmatpush1.bf16.msra.mxu0 %v967
        %1002 = vmatprep.subr.bf16.mxu0 0
        %1003 = vmatpush1.bf16.msra.mxu0 %v968
        %1004 = vmatprep.subr.bf16.mxu0 0
        %1005 = vmatpush1.bf16.msra.mxu0 %v969
        %1006 = vmatprep.subr.bf16.mxu0 0
        %1007 = vmatpush1.bf16.msra.mxu0 %v970
        %1008 = vmatprep.subr.bf16.mxu0 0
        %1009 = vmatpush1.bf16.msra.mxu0 %v971
        %1010 = vmatprep.subr.bf16.mxu0 0
        %1011 = vmatpush1.bf16.msra.mxu0 %v972
        %1012 = vmatprep.subr.bf16.mxu0 0
        %1013 = vmatpush1.bf16.msra.mxu0 %v973
        %1014 = vmatprep.subr.bf16.mxu0 0
        %1015 = vmatpush1.bf16.msra.mxu0 %v974
        %1016 = vmatprep.subr.bf16.mxu0 0
        %1017 = vmatpush1.bf16.msra.mxu0 %v975
        %1018 = vmatprep.subr.bf16.mxu0 0
        %1019 = vmatpush1.bf16.msra.mxu0 %v976
        %1020 = vmatprep.subr.bf16.mxu0 0
        %1021 = vmatpush1.bf16.msra.mxu0 %v977
        %1022 = vmatprep.subr.bf16.mxu0 0
        %1023 = vmatpush1.bf16.msra.mxu0 %v978
        %1024 = vmatprep.subr.bf16.mxu0 0
        %1025 = vmatpush1.bf16.msra.mxu0 %v979
        %1026 = vmatprep.subr.bf16.mxu0 0
        %1027 = vmatpush1.bf16.msra.mxu0 %v980
        %1028 = vmatprep.subr.bf16.mxu0 0
        %1029 = vmatpush1.bf16.msra.mxu0 %v981
        %1030 = vmatprep.mubr.bf16.mxu0 %v862
        %1031 = vmatmul.mubr.bf16.gmra.mrb[0].mxu0 %v861
        %v1032 = vpop.f32.mrb[0].mxu0
        %v1033 = vadd.f32 %v900, %v1032
        %v1034 = vpop.f32.mrb[0].mxu0
        %v1035 = vpop.f32.mrb[0].mxu0
        %v1036 = vadd.f32 %v900, %v1035
        %v1037 = vpop.f32.mrb[0].mxu0
        %1038 = vdwg.mxu0
        %v1039 = vmul.f32 %v1033, 0.5
        %v1040 = vmul.f32 %v1036, 0.5
        %v1041 = vtanh.pop %v1039
        %v1042 = vtanh.pop %v1040
        %v1043 = vadd.f32 %v1041, 1.0
        %v1044 = vadd.f32 %v1042, 1.0
        %v1045 = vmul.f32 %v1043, 0.5
        %v1046 = vmul.f32 %v1044, 0.5
        %1047 = vst [vmem:[%s341] sm:$0xff] %v1045
        %1048 = vst [vmem:[%s341 + $0x8] sm:$0xff] %v1046
        %s1049 = sand.u32 %s186, 1
        %s1050 = scalar_lea.sflag [#allocation4], %s1049
        %s1051 = sand.u32 %s186, 1
        %s1052 = smul.addr %s1051, 16
        %s1053 = scalar_lea.vmem [#allocation10], %s1052
        // Predicated region
        $region65: #{tpu_custom_call.1} parent=47 // pred_check
          %p1054 = pneg %p196
        $region66: #{tpu_custom_call.1} parent=47 // pred_check_branch
          %1056 = sbr.rel (%p1054) target = $region68
        $region67: #{tpu_custom_call.1} parent=47 // pred_region
          %s1057 = smul.u32 2, %s26
          %s1059 = ssub.s32 256, 256
          %1060 = vsyncadd %s1050, %s1059
          %s1061 = smul.addr %s1057, 128
          %s1062 = scalar_lea.hbm %s7, %s1061
          %s1063 = sshll.u32 %s1053, 4
          %s1064 = int_to_ptr.vmem [resolvable:$true] %s1063
          %1069 = dma.vmem_to_hbm [thread:$0]  %s1064, 256, %s1062, %s1050, 128, 128, 8
        $region68: #{tpu_custom_call.1} parent=47 // pred_fallthru
          _
      $region48: #{tpu_custom_call.1} parent=5 // pred_fallthru
        _
      %p1070 = scmp.le.s32.totalorder 2, %s21
      // Predicated region
      $region69: #{tpu_custom_call.1} parent=5 // pred_check
        %p1071 = pneg %p1070
      $region70: #{tpu_custom_call.1} parent=5 // pred_check_branch
        %1073 = sbr.rel (%p1071) target = $region72
      $region71: #{tpu_custom_call.1} parent=5 // pred_region
        %s1074 = ssub.s32 %s21, 2
        // Predicated region
        $region73: #{tpu_custom_call.1} parent=71 // pred_check
          %p1075 = pneg %p202
        $region74: #{tpu_custom_call.1} parent=71 // pred_check_branch
          %1077 = sbr.rel (%p1075) target = $region76
        $region75: #{tpu_custom_call.1} parent=71 // pred_region
          %s1078 = sand.u32 %s187, 1
          %s1079 = scalar_lea.sflag [#allocation4], %s1078
          %s1080 = sand.u32 %s187, 1
          %s1081 = smul.addr %s1080, 16
          %s1082 = scalar_lea.vmem [#allocation10], %s1081
          %1083 = dma.done %s1079, 256
        $region76: #{tpu_custom_call.1} parent=71 // pred_fallthru
          _
      $region72: #{tpu_custom_call.1} parent=5 // pred_fallthru
        _
    $region6: #{tpu_custom_call.1} parent=1 // loop_footer
      %s25 = sadd.s32 1, %s21
    $region7: #{tpu_custom_call.1} parent=1 // loop_footer_branch
      %20 = sbr.rel target = $region3
    $region8: #{tpu_custom_call.1} parent=1 // loop_exit
      _
    %1084 = vsyncpa [#allocation3], 1
    %s1085 = scalar_lea.sflag [#allocation3], 1
    %1086 = vsyncpa %s1085, 1
    %1087 = vsyncpa [#allocation6], 1
    %1088 = vsyncpa [#allocation9], 1
    %1089 = vsyncpa [#allocation4], 1
    %s1090 = scalar_lea.sflag [#allocation4], 1
    %1091 = vsyncpa %s1090, 1

// kernel: tpu_custom_call.1
$region0: #{tpu_custom_call.1}
  #allocation0 [shape = 'u32[]', space=smem, size = 0x4, offset = 0x4, fixed_abs, tag = 'smem constant byte address 0x4 - core index']
  #allocation1 [shape = 'u32[144,128]{1,0:T(1,128)}', space=vmem, size = 0x12000, scoped, tag = 'internal scratch']
  %s0 = inlined_call_operand.hbm [shape: bf16[32,256], index: 0, kind: input, shape index: {}]
  %s1 = inlined_call_operand.hbm [shape: bf16[256,256], index: 1, kind: input, shape index: {}]
  %s2 = inlined_call_operand.vmem [shape: f32[1,256], index: 2, kind: input, shape index: {}]
  %s3 = inlined_call_operand.hbm [shape: bf16[256,256], index: 3, kind: input, shape index: {}]
  %s4 = inlined_call_operand.vmem [shape: f32[1,256], index: 4, kind: input, shape index: {}]
  %s5 = inlined_call_operand.hbm [shape: bf16[256,128], index: 5, kind: input, shape index: {}]
  %s6 = inlined_call_operand.vmem [shape: f32[1,128], index: 6, kind: input, shape index: {}]
  %s7 = inlined_call_operand.hbm [shape: f32[32,128], index: 7, kind: output, shape index: {}]
  %s8 = sld [smem:[#allocation0]]
  $region77: #{tpu_custom_call.1} parent=0
    _
  %s10 = ssub.s32 1, %s8
  %s11 = scalar_select 0, %s10, %s8
  $region1: #{tpu_custom_call.1} parent=0
    #allocation2 [shape = 'u8[16384]{0}', space=vmem, size = 0x4000, scoped, tag = 'input window, operand 0']
    #allocation3 [shape = 's32[2]{0}', space=sflag, size = 0x8, scoped, tag = 'scoped memory for tpu_custom_call.1']
    #allocation4 [shape = 's32[2]{0}', space=sflag, size = 0x8, scoped, tag = 'scoped memory for tpu_custom_call.1']
    #allocation5 [shape = 'u8[131072]{0}', space=vmem, size = 0x20000, scoped, tag = 'input window, operand 1, single buffered']
    #allocation6 [shape = 's32[1]{0}', space=sflag, size = 0x4, scoped, tag = 'scoped memory for tpu_custom_call.1']
    #allocation7 [shape = 'u8[131072]{0}', space=vmem, size = 0x20000, scoped, tag = 'input window, operand 3, single buffered']
    #allocation8 [shape = 'u8[65536]{0}', space=vmem, size = 0x10000, scoped, tag = 'input window, operand 5, single buffered']
    #allocation9 [shape = 's32[1]{0}', space=sflag, size = 0x4, scoped, tag = 'scoped memory for tpu_custom_call.1']
    #allocation10 [shape = 'u8[16384]{0}', space=vmem, size = 0x4000, scoped, tag = 'output window, operand 0']
    %12 = vsyncpa [#allocation3], 0
    %s13 = scalar_lea.sflag [#allocation3], 1
    %14 = vsyncpa %s13, 0
    %15 = vsyncpa [#allocation6], 0
    %16 = vsyncpa [#allocation9], 0
    %17 = vsyncpa [#allocation4], 0
    %s18 = scalar_lea.sflag [#allocation4], 1
    %19 = vsyncpa %s18, 0
    loop: start=0, step=1, limit=4
    $region2: #{tpu_custom_call.1} parent=1 // loop_pre_header
      _
    $region3: #{tpu_custom_call.1} parent=1 // loop_header
      %s21 = sphi 0, %s25
      %p22 = scmp.ge.s32.totalorder %s21, 4
      %s31 = sphi 0, %s33
      %s34 = sphi 0, %s31
      %s35 = sphi 0, %s34
      %s51 = sphi 0, %s35
      %s55 = sphi 0, %s55
      %s57 = sphi 0, %s55
      %s58 = sphi 0, %s57
      %s72 = sphi 0, %s58
      %s76 = sphi 0, %s76
      %s78 = sphi 0, %s76
      %s79 = sphi 0, %s78
      %s93 = sphi 0, %s79
      %s97 = sphi 0, %s97
      %s99 = sphi 0, %s97
      %s100 = sphi 0, %s99
      %s114 = sphi 0, %s100
      %s118 = sphi 0, %s118
      %s120 = sphi 0, %s118
      %s121 = sphi 0, %s120
      %s135 = sphi 0, %s121
      %s139 = sphi 0, %s139
      %s141 = sphi 0, %s139
      %s142 = sphi 0, %s141
      %s156 = sphi 0, %s142
      %s160 = sphi 0, %s160
      %s162 = sphi 0, %s160
      %s163 = sphi 0, %s162
      %s177 = sphi 0, %s163
      %s183 = sphi 0, %s185
      %s186 = sphi 0, %s183
      %s187 = sphi 0, %s186
      %s203 = sphi 0, %s187
    $region4: #{tpu_custom_call.1} parent=1 // loop_header_branch
      %24 = sbr.rel (%p22) target = $region8
    $region5: #{tpu_custom_call.1} parent=1 // loop_body
      %s26 = ssub.s32 %s21, 1
      %s27 = ssub.s32 %s21, 2
      %s28 = sadd.s32 %s21, 1
      %s29 = ssub.s32 %s21, %s28
      %p30 = scmp.eq.s32.totalorder %s29, 0
      %s32 = sadd.s32 %s31, 1
      %s33 = scalar_select %p30, %s31, %s32
      %p36 = pneg %p30
      %p37 = scmp.eq.s32.totalorder %s21, 1
      %p38 = por %p36, %p37
      %p39 = scmp.ne.s32.totalorder %s31, %s34
      %p40 = scmp.eq.s32.totalorder %s21, 0
      %p41 = por %p39, %p40
      %p42 = scmp.ne.s32.totalorder %s31, %s34
      %p43 = scmp.eq.s32.totalorder %s26, 1
      %p44 = por %p42, %p43
      %p45 = scmp.ne.s32.totalorder %s34, %s35
      %p46 = scmp.eq.s32.totalorder %s26, 0
      %p47 = por %p45, %p46
      %p48 = scmp.ne.s32.totalorder %s34, %s35
      %p49 = scmp.eq.s32.totalorder %s27, 1
      %p50 = por %p48, %p49
      %p52 = scmp.ne.s32.totalorder %s35, %s51
      %p53 = scmp.eq.s32.totalorder %s27, 0
      %p54 = por %p52, %p53
      %s56 = sadd.s32 %s55, 1
      %p59 = scmp.eq.s32.totalorder %s21, 1
      %p60 = scmp.ne.s32.totalorder %s55, %s57
      %p61 = scmp.eq.s32.totalorder %s21, 0
      %p62 = por %p60, %p61
      %p63 = scmp.ne.s32.totalorder %s55, %s57
      %p64 = scmp.eq.s32.totalorder %s26, 1
      %p65 = por %p63, %p64
      %p66 = scmp.ne.s32.totalorder %s57, %s58
      %p67 = scmp.eq.s32.totalorder %s26, 0
      %p68 = por %p66, %p67
      %p69 = scmp.ne.s32.totalorder %s57, %s58
      %p70 = scmp.eq.s32.totalorder %s27, 1
      %p71 = por %p69, %p70
      %p73 = scmp.ne.s32.totalorder %s58, %s72
      %p74 = scmp.eq.s32.totalorder %s27, 0
      %p75 = por %p73, %p74
      %s77 = sadd.s32 %s76, 1
      %p80 = scmp.eq.s32.totalorder %s21, 1
      %p81 = scmp.ne.s32.totalorder %s76, %s78
      %p82 = scmp.eq.s32.totalorder %s21, 0
      %p83 = por %p81, %p82
      %p84 = scmp.ne.s32.totalorder %s76, %s78
      %p85 = scmp.eq.s32.totalorder %s26, 1
      %p86 = por %p84, %p85
      %p87 = scmp.ne.s32.totalorder %s78, %s79
      %p88 = scmp.eq.s32.totalorder %s26, 0
      %p89 = por %p87, %p88
      %p90 = scmp.ne.s32.totalorder %s78, %s79
      %p91 = scmp.eq.s32.totalorder %s27, 1
      %p92 = por %p90, %p91
      %p94 = scmp.ne.s32.totalorder %s79, %s93
      %p95 = scmp.eq.s32.totalorder %s27, 0
      %p96 = por %p94, %p95
      %s98 = sadd.s32 %s97, 1
      %p101 = scmp.eq.s32.totalorder %s21, 1
      %p102 = scmp.ne.s32.totalorder %s97, %s99
      %p103 = scmp.eq.s32.totalorder %s21, 0
      %p104 = por %p102, %p103
      %p105 = scmp.ne.s32.totalorder %s97, %s99
      %p106 = scmp.eq.s32.totalorder %s26, 1
      %p107 = por %p105, %p106
      %p108 = scmp.ne.s32.totalorder %s99, %s100
      %p109 = scmp.eq.s32.totalorder %s26, 0
      %p110 = por %p108, %p109
      %p111 = scmp.ne.s32.totalorder %s99, %s100
      %p112 = scmp.eq.s32.totalorder %s27, 1
      %p113 = por %p111, %p112
      %p115 = scmp.ne.s32.totalorder %s100, %s114
      %p116 = scmp.eq.s32.totalorder %s27, 0
      %p117 = por %p115, %p116
      %s119 = sadd.s32 %s118, 1
      %p122 = scmp.eq.s32.totalorder %s21, 1
      %p123 = scmp.ne.s32.totalorder %s118, %s120
      %p124 = scmp.eq.s32.totalorder %s21, 0
      %p125 = por %p123, %p124
      %p126 = scmp.ne.s32.totalorder %s118, %s120
      %p127 = scmp.eq.s32.totalorder %s26, 1
      %p128 = por %p126, %p127
      %p129 = scmp.ne.s32.totalorder %s120, %s121
      %p130 = scmp.eq.s32.totalorder %s26, 0
      %p131 = por %p129, %p130
      %p132 = scmp.ne.s32.totalorder %s120, %s121
      %p133 = scmp.eq.s32.totalorder %s27, 1
      %p134 = por %p132, %p133
      %p136 = scmp.ne.s32.totalorder %s121, %s135
      %p137 = scmp.eq.s32.totalorder %s27, 0
      %p138 = por %p136, %p137
      %s140 = sadd.s32 %s139, 1
      %p143 = scmp.eq.s32.totalorder %s21, 1
      %p144 = scmp.ne.s32.totalorder %s139, %s141
      %p145 = scmp.eq.s32.totalorder %s21, 0
      %p146 = por %p144, %p145
      %p147 = scmp.ne.s32.totalorder %s139, %s141
      %p148 = scmp.eq.s32.totalorder %s26, 1
      %p149 = por %p147, %p148
      %p150 = scmp.ne.s32.totalorder %s141, %s142
      %p151 = scmp.eq.s32.totalorder %s26, 0
      %p152 = por %p150, %p151
      %p153 = scmp.ne.s32.totalorder %s141, %s142
      %p154 = scmp.eq.s32.totalorder %s27, 1
      %p155 = por %p153, %p154
      %p157 = scmp.ne.s32.totalorder %s142, %s156
      %p158 = scmp.eq.s32.totalorder %s27, 0
      %p159 = por %p157, %p158
      %s161 = sadd.s32 %s160, 1
      %p164 = scmp.eq.s32.totalorder %s21, 1
      %p165 = scmp.ne.s32.totalorder %s160, %s162
      %p166 = scmp.eq.s32.totalorder %s21, 0
      %p167 = por %p165, %p166
      %p168 = scmp.ne.s32.totalorder %s160, %s162
      %p169 = scmp.eq.s32.totalorder %s26, 1
      %p170 = por %p168, %p169
      %p171 = scmp.ne.s32.totalorder %s162, %s163
      %p172 = scmp.eq.s32.totalorder %s26, 0
      %p173 = por %p171, %p172
      %p174 = scmp.ne.s32.totalorder %s162, %s163
      %p175 = scmp.eq.s32.totalorder %s27, 1
      %p176 = por %p174, %p175
      %p178 = scmp.ne.s32.totalorder %s163, %s177
      %p179 = scmp.eq.s32.totalorder %s27, 0
      %p180 = por %p178, %p179
      %s181 = ssub.s32 %s21, %s28
      %p182 = scmp.eq.s32.totalorder %s181, 0
      %s184 = sadd.s32 %s183, 1
      %s185 = scalar_select %p182, %s183, %s184
      %p188 = pneg %p182
      %p189 = scmp.eq.s32.totalorder %s21, 1
      %p190 = por %p188, %p189
      %p191 = scmp.ne.s32.totalorder %s183, %s186
      %p192 = scmp.eq.s32.totalorder %s21, 0
      %p193 = por %p191, %p192
      %p194 = scmp.ne.s32.totalorder %s183, %s186
      %p195 = scmp.eq.s32.totalorder %s26, 1
      %p196 = por %p194, %p195
      %p197 = scmp.ne.s32.totalorder %s186, %s187
      %p198 = scmp.eq.s32.totalorder %s26, 0
      %p199 = por %p197, %p198
      %p200 = scmp.ne.s32.totalorder %s186, %s187
      %p201 = scmp.eq.s32.totalorder %s27, 1
      %p202 = por %p200, %p201
      %p204 = scmp.ne.s32.totalorder %s187, %s203
      %p205 = scmp.eq.s32.totalorder %s27, 0
      %p206 = por %p204, %p205
      %p207 = scmp.le.s32.totalorder 1, %s21
      %p208 = scmp.lt.s32.totalorder %s21, 3
      %p209 = pnand %p207, %p208
      %p210 = pneg %p209
      // Predicated region
      $region9: #{tpu_custom_call.1} parent=5 // pred_check
        _
      $region10: #{tpu_custom_call.1} parent=5 // pred_check_branch
        %212 = sbr.rel (%p209) target = $region12
      $region11: #{tpu_custom_call.1} parent=5 // pred_region
        %s213 = ssub.s32 %s21, 1
        // Predicated region
        $region13: #{tpu_custom_call.1} parent=11 // pred_check
          %p214 = pneg %p68
        $region14: #{tpu_custom_call.1} parent=11 // pred_check_branch
          %216 = sbr.rel (%p214) target = $region16
        $region15: #{tpu_custom_call.1} parent=11 // pred_region
          %s218 = ssub.s32 4096, 4096
          %219 = vsyncadd [#allocation6], %s218
          %s220 = sshll.u32 [#allocation5], 4
          %s221 = int_to_ptr.vmem [resolvable:$true] %s220
          %226 = dma.hbm_to_vmem [thread:$0]  %s1, 4096, %s221, [#allocation6], 128, 128, 8
        $region16: #{tpu_custom_call.1} parent=11 // pred_fallthru
          _
        // Predicated region
        $region17: #{tpu_custom_call.1} parent=11 // pred_check
          %p227 = pneg %p89
        $region18: #{tpu_custom_call.1} parent=11 // pred_check_branch
          %229 = sbr.rel (%p227) target = $region20
        $region19: #{tpu_custom_call.1} parent=11 // pred_region
          _
        $region20: #{tpu_custom_call.1} parent=11 // pred_fallthru
          _
        // Predicated region
        $region21: #{tpu_custom_call.1} parent=11 // pred_check
          %p230 = pneg %p110
        $region22: #{tpu_custom_call.1} parent=11 // pred_check_branch
          %232 = sbr.rel (%p230) target = $region24
        $region23: #{tpu_custom_call.1} parent=11 // pred_region
          %s234 = ssub.s32 4096, 4096
          %235 = vsyncadd [#allocation6], %s234
          %s236 = sshll.u32 [#allocation7], 4
          %s237 = int_to_ptr.vmem [resolvable:$true] %s236
          %242 = dma.hbm_to_vmem [thread:$0]  %s3, 4096, %s237, [#allocation6], 128, 128, 8
        $region24: #{tpu_custom_call.1} parent=11 // pred_fallthru
          _
        // Predicated region
        $region25: #{tpu_custom_call.1} parent=11 // pred_check
          %p243 = pneg %p131
        $region26: #{tpu_custom_call.1} parent=11 // pred_check_branch
          %245 = sbr.rel (%p243) target = $region28
        $region27: #{tpu_custom_call.1} parent=11 // pred_region
          _
        $region28: #{tpu_custom_call.1} parent=11 // pred_fallthru
          _
        // Predicated region
        $region29: #{tpu_custom_call.1} parent=11 // pred_check
          %p246 = pneg %p152
        $region30: #{tpu_custom_call.1} parent=11 // pred_check_branch
          %248 = sbr.rel (%p246) target = $region32
        $region31: #{tpu_custom_call.1} parent=11 // pred_region
          %s250 = ssub.s32 2048, 2048
          %251 = vsyncadd [#allocation9], %s250
          %s252 = sshll.u32 [#allocation8], 4
          %s253 = int_to_ptr.vmem [resolvable:$true] %s252
          %258 = dma.hbm_to_vmem [thread:$0]  %s5, 2048, %s253, [#allocation9], 64, 64, 4
        $region32: #{tpu_custom_call.1} parent=11 // pred_fallthru
          _
        // Predicated region
        $region33: #{tpu_custom_call.1} parent=11 // pred_check
          %p259 = pneg %p173
        $region34: #{tpu_custom_call.1} parent=11 // pred_check_branch
          %261 = sbr.rel (%p259) target = $region36
        $region35: #{tpu_custom_call.1} parent=11 // pred_region
          _
        $region36: #{tpu_custom_call.1} parent=11 // pred_fallthru
          _
      $region12: #{tpu_custom_call.1} parent=5 // pred_fallthru
        _
      %p262 = scmp.lt.s32.totalorder %s21, 2
      // Predicated region
      $region37: #{tpu_custom_call.1} parent=5 // pred_check
        %p263 = pneg %p262
      $region38: #{tpu_custom_call.1} parent=5 // pred_check_branch
        %265 = sbr.rel (%p263) target = $region40
      $region39: #{tpu_custom_call.1} parent=5 // pred_region
        // Predicated region
        $region41: #{tpu_custom_call.1} parent=39 // pred_check
          %p266 = pneg %p41
        $region42: #{tpu_custom_call.1} parent=39 // pred_check_branch
          %268 = sbr.rel (%p266) target = $region44
        $region43: #{tpu_custom_call.1} parent=39 // pred_region
          %s269 = sand.u32 %s31, 1
          %s270 = scalar_lea.sflag [#allocation3], %s269
          %s271 = sand.u32 %s31, 1
          %s272 = smul.addr %s271, 16
          %s273 = scalar_lea.vmem [#allocation2], %s272
          %s274 = smul.u32 2, %s21
          %s276 = ssub.s32 256, 256
          %277 = vsyncadd %s270, %s276
          %s278 = smul.addr %s274, 2
          %s279 = smul.addr %s278, 64
          %s280 = scalar_lea.hbm %s0, %s279
          %s281 = sshll.u32 %s273, 4
          %s282 = int_to_ptr.vmem [resolvable:$true] %s281
          %287 = dma.hbm_to_vmem [thread:$0]  %s280, 256, %s282, %s270, 128, 128, 8
        $region44: #{tpu_custom_call.1} parent=39 // pred_fallthru
          _
      $region40: #{tpu_custom_call.1} parent=5 // pred_fallthru
        _
      %p288 = scmp.le.s32.totalorder 1, %s21
      %p289 = scmp.lt.s32.totalorder %s21, 3
      %p290 = pnand %p288, %p289
      %p291 = pneg %p290
      // Predicated region
      $region45: #{tpu_custom_call.1} parent=5 // pred_check
        _
      $region46: #{tpu_custom_call.1} parent=5 // pred_check_branch
        %293 = sbr.rel (%p290) target = $region48
      $region47: #{tpu_custom_call.1} parent=5 // pred_region
        %s294 = ssub.s32 %s21, 1
        %s295 = sand.u32 %s34, 1
        %s296 = scalar_lea.sflag [#allocation3], %s295
        %s297 = sand.u32 %s34, 1
        %s298 = smul.addr %s297, 16
        %s299 = scalar_lea.vmem [#allocation2], %s298
        // Predicated region
        $region49: #{tpu_custom_call.1} parent=47 // pred_check
          %p300 = pneg %p47
        $region50: #{tpu_custom_call.1} parent=47 // pred_check_branch
          %302 = sbr.rel (%p300) target = $region52
        $region51: #{tpu_custom_call.1} parent=47 // pred_region
          %303 = dma.done %s296, 256
        $region52: #{tpu_custom_call.1} parent=47 // pred_fallthru
          _
        // Predicated region
        $region53: #{tpu_custom_call.1} parent=47 // pred_check
          %p304 = pneg %p68
        $region54: #{tpu_custom_call.1} parent=47 // pred_check_branch
          %306 = sbr.rel (%p304) target = $region56
        $region55: #{tpu_custom_call.1} parent=47 // pred_region
          %307 = dma.done [#allocation6], 4096
        $region56: #{tpu_custom_call.1} parent=47 // pred_fallthru
          _
        // Predicated region
        $region57: #{tpu_custom_call.1} parent=47 // pred_check
          %p308 = pneg %p110
        $region58: #{tpu_custom_call.1} parent=47 // pred_check_branch
          %310 = sbr.rel (%p308) target = $region60
        $region59: #{tpu_custom_call.1} parent=47 // pred_region
          %311 = dma.done [#allocation6], 4096
        $region60: #{tpu_custom_call.1} parent=47 // pred_fallthru
          _
        // Predicated region
        $region61: #{tpu_custom_call.1} parent=47 // pred_check
          %p312 = pneg %p152
        $region62: #{tpu_custom_call.1} parent=47 // pred_check_branch
          %314 = sbr.rel (%p312) target = $region64
        $region63: #{tpu_custom_call.1} parent=47 // pred_region
          %315 = dma.done [#allocation9], 2048
        $region64: #{tpu_custom_call.1} parent=47 // pred_fallthru
          _
        %s316 = sand.u32 %s34, 1
        %s317 = scalar_lea.sflag [#allocation3], %s316
        %s318 = sand.u32 %s34, 1
        %s319 = smul.addr %s318, 16
        %s320 = scalar_lea.vmem [#allocation2], %s319
        %p321 = pneg %p47
        %p322 = pneg %p44
        %p323 = pneg %p68
        %p324 = pneg %p65
        %p325 = pneg %p89
        %p326 = pneg %p86
        %p327 = pneg %p110
        %p328 = pneg %p107
        %p329 = pneg %p131
        %p330 = pneg %p128
        %p331 = pneg %p152
        %p332 = pneg %p149
        %p333 = pneg %p173
        %p334 = pneg %p170
        %p335 = pneg %p199
        %p336 = pneg %p196
        %s337 = sand.u32 %s186, 1
        %s338 = scalar_lea.sflag [#allocation4], %s337
        %s339 = sand.u32 %s186, 1
        %s340 = smul.addr %s339, 16
        %s341 = scalar_lea.vmem [#allocation10], %s340
        %s342 = smul.u32 2, %s26
        %s343 = smul.u32 2, %s26
        %v345 = vld [vmem:[%s299] sm:$0xff]
        %v346 = vld [vmem:[%s299 + $0x8] sm:$0xff]
        %v347 = vld [vmem:[#allocation5] sm:$0xff]
        %v348 = vld [vmem:[#allocation5 + $0x8] sm:$0xff]
        %v349 = vld [vmem:[#allocation5 + $0x10] sm:$0xff]
        %v350 = vld [vmem:[#allocation5 + $0x18] sm:$0xff]
        %v351 = vld [vmem:[#allocation5 + $0x20] sm:$0xff]
        %v352 = vld [vmem:[#allocation5 + $0x28] sm:$0xff]
        %v353 = vld [vmem:[#allocation5 + $0x30] sm:$0xff]
        %v354 = vld [vmem:[#allocation5 + $0x38] sm:$0xff]
        %v355 = vld [vmem:[#allocation5 + $0x40] sm:$0xff]
        %v356 = vld [vmem:[#allocation5 + $0x48] sm:$0xff]
        %v357 = vld [vmem:[#allocation5 + $0x50] sm:$0xff]
        %v358 = vld [vmem:[#allocation5 + $0x58] sm:$0xff]
        %v359 = vld [vmem:[#allocation5 + $0x60] sm:$0xff]
        %v360 = vld [vmem:[#allocation5 + $0x68] sm:$0xff]
        %v361 = vld [vmem:[#allocation5 + $0x70] sm:$0xff]
        %v362 = vld [vmem:[#allocation5 + $0x78] sm:$0xff]
        %v363 = vld [vmem:[#allocation5 + $0x80] sm:$0xff]
        %v364 = vld [vmem:[#allocation5 + $0x88] sm:$0xff]
        %v365 = vld [vmem:[#allocation5 + $0x90] sm:$0xff]
        %v366 = vld [vmem:[#allocation5 + $0x98] sm:$0xff]
        %v367 = vld [vmem:[#allocation5 + $0xa0] sm:$0xff]
        %v368 = vld [vmem:[#allocation5 + $0xa8] sm:$0xff]
        %v369 = vld [vmem:[#allocation5 + $0xb0] sm:$0xff]
        %v370 = vld [vmem:[#allocation5 + $0xb8] sm:$0xff]
        %v371 = vld [vmem:[#allocation5 + $0xc0] sm:$0xff]
        %v372 = vld [vmem:[#allocation5 + $0xc8] sm:$0xff]
        %v373 = vld [vmem:[#allocation5 + $0xd0] sm:$0xff]
        %v374 = vld [vmem:[#allocation5 + $0xd8] sm:$0xff]
        %v375 = vld [vmem:[#allocation5 + $0xe0] sm:$0xff]
        %v376 = vld [vmem:[#allocation5 + $0xe8] sm:$0xff]
        %v377 = vld [vmem:[#allocation5 + $0xf0] sm:$0xff]
        %v378 = vld [vmem:[#allocation5 + $0xf8] sm:$0xff]
        %v379 = vld [vmem:[%s2] sm:$0x3]
        %v381 = vlaneseq
        %v382 = vshrl.u32 %v381, 7
        %v383 = vsub.s32 0, %v382
        %v384 = vrot.slane %v379, %v383
        %v385 = vlaneseq
        %v386 = vshrl.u32 %v385, 7
        %v387 = vsub.s32 1, %v386
        %v388 = vrot.slane %v379, %v387
        %v393 = vunpack.c.l.b16 %v345
        %v394 = vunpack.c.h.b16 %v345
        %v395 = vunpack.c.l.b16 %v346
        %v396 = vunpack.c.h.b16 %v346
        %v397 = vpack.c.b16 %v395, %v393
        %v398 = vpack.c.b16 %v396, %v394
        %v433 = vunpack.c.l.b16 %v347
        %v434 = vunpack.c.h.b16 %v347
        %v435 = vunpack.c.l.b16 %v348
        %v436 = vunpack.c.h.b16 %v348
        %v437 = vunpack.c.l.b16 %v349
        %v438 = vunpack.c.h.b16 %v349
        %v439 = vunpack.c.l.b16 %v350
        %v440 = vunpack.c.h.b16 %v350
        %v441 = vunpack.c.l.b16 %v351
        %v442 = vunpack.c.h.b16 %v351
        %v443 = vunpack.c.l.b16 %v352
        %v444 = vunpack.c.h.b16 %v352
        %v445 = vunpack.c.l.b16 %v353
        %v446 = vunpack.c.h.b16 %v353
        %v447 = vunpack.c.l.b16 %v354
        %v448 = vunpack.c.h.b16 %v354
        %v449 = vunpack.c.l.b16 %v355
        %v450 = vunpack.c.h.b16 %v355
        %v451 = vunpack.c.l.b16 %v356
        %v452 = vunpack.c.h.b16 %v356
        %v453 = vunpack.c.l.b16 %v357
        %v454 = vunpack.c.h.b16 %v357
        %v455 = vunpack.c.l.b16 %v358
        %v456 = vunpack.c.h.b16 %v358
        %v457 = vunpack.c.l.b16 %v359
        %v458 = vunpack.c.h.b16 %v359
        %v459 = vunpack.c.l.b16 %v360
        %v460 = vunpack.c.h.b16 %v360
        %v461 = vunpack.c.l.b16 %v361
        %v462 = vunpack.c.h.b16 %v361
        %v463 = vunpack.c.l.b16 %v362
        %v464 = vunpack.c.h.b16 %v362
        %v465 = vunpack.c.l.b16 %v363
        %v466 = vunpack.c.h.b16 %v363
        %v467 = vunpack.c.l.b16 %v364
        %v468 = vunpack.c.h.b16 %v364
        %v469 = vunpack.c.l.b16 %v365
        %v470 = vunpack.c.h.b16 %v365
        %v471 = vunpack.c.l.b16 %v366
        %v472 = vunpack.c.h.b16 %v366
        %v473 = vunpack.c.l.b16 %v367
        %v474 = vunpack.c.h.b16 %v367
        %v475 = vunpack.c.l.b16 %v368
        %v476 = vunpack.c.h.b16 %v368
        %v477 = vunpack.c.l.b16 %v369
        %v478 = vunpack.c.h.b16 %v369
        %v479 = vunpack.c.l.b16 %v370
        %v480 = vunpack.c.h.b16 %v370
        %v481 = vunpack.c.l.b16 %v371
        %v482 = vunpack.c.h.b16 %v371
        %v483 = vunpack.c.l.b16 %v372
        %v484 = vunpack.c.h.b16 %v372
        %v485 = vunpack.c.l.b16 %v373
        %v486 = vunpack.c.h.b16 %v373
        %v487 = vunpack.c.l.b16 %v374
        %v488 = vunpack.c.h.b16 %v374
        %v489 = vunpack.c.l.b16 %v375
        %v490 = vunpack.c.h.b16 %v375
        %v491 = vunpack.c.l.b16 %v376
        %v492 = vunpack.c.h.b16 %v376
        %v493 = vunpack.c.l.b16 %v377
        %v494 = vunpack.c.h.b16 %v377
        %v495 = vunpack.c.l.b16 %v378
        %v496 = vunpack.c.h.b16 %v378
        %v497 = vpack.c.b16 %v435, %v433
        %v498 = vpack.c.b16 %v436, %v434
        %v499 = vpack.c.b16 %v439, %v437
        %v500 = vpack.c.b16 %v440, %v438
        %v501 = vpack.c.b16 %v443, %v441
        %v502 = vpack.c.b16 %v444, %v442
        %v503 = vpack.c.b16 %v447, %v445
        %v504 = vpack.c.b16 %v448, %v446
        %v505 = vpack.c.b16 %v451, %v449
        %v506 = vpack.c.b16 %v452, %v450
        %v507 = vpack.c.b16 %v455, %v453
        %v508 = vpack.c.b16 %v456, %v454
        %v509 = vpack.c.b16 %v459, %v457
        %v510 = vpack.c.b16 %v460, %v458
        %v511 = vpack.c.b16 %v463, %v461
        %v512 = vpack.c.b16 %v464, %v462
        %v513 = vpack.c.b16 %v467, %v465
        %v514 = vpack.c.b16 %v468, %v466
        %v515 = vpack.c.b16 %v471, %v469
        %v516 = vpack.c.b16 %v472, %v470
        %v517 = vpack.c.b16 %v475, %v473
        %v518 = vpack.c.b16 %v476, %v474
        %v519 = vpack.c.b16 %v479, %v477
        %v520 = vpack.c.b16 %v480, %v478
        %v521 = vpack.c.b16 %v483, %v481
        %v522 = vpack.c.b16 %v484, %v482
        %v523 = vpack.c.b16 %v487, %v485
        %v524 = vpack.c.b16 %v488, %v486
        %v525 = vpack.c.b16 %v491, %v489
        %v526 = vpack.c.b16 %v492, %v490
        %v527 = vpack.c.b16 %v495, %v493
        %v528 = vpack.c.b16 %v496, %v494
        %561 = vmatprep.subr.bf16.mxu0 %v498
        %562 = vmatpush1.bf16.msra.mxu0 %v497
        %563 = vmatprep.subr.bf16.mxu0 %v500
        %564 = vmatpush1.bf16.msra.mxu0 %v499
        %565 = vmatprep.subr.bf16.mxu0 %v502
        %566 = vmatpush1.bf16.msra.mxu0 %v501
        %567 = vmatprep.subr.bf16.mxu0 %v504
        %568 = vmatpush1.bf16.msra.mxu0 %v503
        %569 = vmatprep.subr.bf16.mxu0 %v506
        %570 = vmatpush1.bf16.msra.mxu0 %v505
        %571 = vmatprep.subr.bf16.mxu0 %v508
        %572 = vmatpush1.bf16.msra.mxu0 %v507
        %573 = vmatprep.subr.bf16.mxu0 %v510
        %574 = vmatpush1.bf16.msra.mxu0 %v509
        %575 = vmatprep.subr.bf16.mxu0 %v512
        %576 = vmatpush1.bf16.msra.mxu0 %v511
        %577 = vmatprep.subr.bf16.mxu0 %v514
        %578 = vmatpush1.bf16.msra.mxu0 %v513
        %579 = vmatprep.subr.bf16.mxu0 %v516
        %580 = vmatpush1.bf16.msra.mxu0 %v515
        %581 = vmatprep.subr.bf16.mxu0 %v518
        %582 = vmatpush1.bf16.msra.mxu0 %v517
        %583 = vmatprep.subr.bf16.mxu0 %v520
        %584 = vmatpush1.bf16.msra.mxu0 %v519
        %585 = vmatprep.subr.bf16.mxu0 %v522
        %586 = vmatpush1.bf16.msra.mxu0 %v521
        %587 = vmatprep.subr.bf16.mxu0 %v524
        %588 = vmatpush1.bf16.msra.mxu0 %v523
        %589 = vmatprep.subr.bf16.mxu0 %v526
        %590 = vmatpush1.bf16.msra.mxu0 %v525
        %591 = vmatprep.subr.bf16.mxu0 %v528
        %592 = vmatpush1.bf16.msra.mxu0 %v527
        %593 = vmatprep.mubr.bf16.mxu0 %v398
        %594 = vmatmul.mubr.bf16.gmra.mrb[0].mxu0 %v397
        %v595 = vpop.f32.mrb[0].mxu0
        %v596 = vadd.f32 %v384, %v595
        %v597 = vpop.f32.mrb[0].mxu0
        %v598 = vadd.f32 %v388, %v597
        %v599 = vpop.f32.mrb[0].mxu0
        %v600 = vadd.f32 %v384, %v599
        %v601 = vpop.f32.mrb[0].mxu0
        %v602 = vadd.f32 %v388, %v601
        %603 = vdwg.mxu0
        %v604 = vmax.f32 %v596, 0.0
        %v605 = vmax.f32 %v598, 0.0
        %v606 = vmax.f32 %v600, 0.0
        %v607 = vmax.f32 %v602, 0.0
        %v608 = vpack.c.bf16 %v606, %v604
        %v609 = vpack.c.bf16 %v607, %v605
        %v610 = vld [vmem:[#allocation7] sm:$0xff]
        %v611 = vld [vmem:[#allocation7 + $0x8] sm:$0xff]
        %v612 = vld [vmem:[#allocation7 + $0x10] sm:$0xff]
        %v613 = vld [vmem:[#allocation7 + $0x18] sm:$0xff]
        %v614 = vld [vmem:[#allocation7 + $0x20] sm:$0xff]
        %v615 = vld [vmem:[#allocation7 + $0x28] sm:$0xff]
        %v616 = vld [vmem:[#allocation7 + $0x30] sm:$0xff]
        %v617 = vld [vmem:[#allocation7 + $0x38] sm:$0xff]
        %v618 = vld [vmem:[#allocation7 + $0x40] sm:$0xff]
        %v619 = vld [vmem:[#allocation7 + $0x48] sm:$0xff]
        %v620 = vld [vmem:[#allocation7 + $0x50] sm:$0xff]
        %v621 = vld [vmem:[#allocation7 + $0x58] sm:$0xff]
        %v622 = vld [vmem:[#allocation7 + $0x60] sm:$0xff]
        %v623 = vld [vmem:[#allocation7 + $0x68] sm:$0xff]
        %v624 = vld [vmem:[#allocation7 + $0x70] sm:$0xff]
        %v625 = vld [vmem:[#allocation7 + $0x78] sm:$0xff]
        %v626 = vld [vmem:[#allocation7 + $0x80] sm:$0xff]
        %v627 = vld [vmem:[#allocation7 + $0x88] sm:$0xff]
        %v628 = vld [vmem:[#allocation7 + $0x90] sm:$0xff]
        %v629 = vld [vmem:[#allocation7 + $0x98] sm:$0xff]
        %v630 = vld [vmem:[#allocation7 + $0xa0] sm:$0xff]
        %v631 = vld [vmem:[#allocation7 + $0xa8] sm:$0xff]
        %v632 = vld [vmem:[#allocation7 + $0xb0] sm:$0xff]
        %v633 = vld [vmem:[#allocation7 + $0xb8] sm:$0xff]
        %v634 = vld [vmem:[#allocation7 + $0xc0] sm:$0xff]
        %v635 = vld [vmem:[#allocation7 + $0xc8] sm:$0xff]
        %v636 = vld [vmem:[#allocation7 + $0xd0] sm:$0xff]
        %v637 = vld [vmem:[#allocation7 + $0xd8] sm:$0xff]
        %v638 = vld [vmem:[#allocation7 + $0xe0] sm:$0xff]
        %v639 = vld [vmem:[#allocation7 + $0xe8] sm:$0xff]
        %v640 = vld [vmem:[#allocation7 + $0xf0] sm:$0xff]
        %v641 = vld [vmem:[#allocation7 + $0xf8] sm:$0xff]
        %v642 = vld [vmem:[%s4] sm:$0x3]
        %v644 = vlaneseq
        %v645 = vshrl.u32 %v644, 7
        %v646 = vsub.s32 0, %v645
        %v647 = vrot.slane %v642, %v646
        %v648 = vlaneseq
        %v649 = vshrl.u32 %v648, 7
        %v650 = vsub.s32 1, %v649
        %v651 = vrot.slane %v642, %v650
        %v686 = vunpack.c.l.b16 %v610
        %v687 = vunpack.c.h.b16 %v610
        %v688 = vunpack.c.l.b16 %v611
        %v689 = vunpack.c.h.b16 %v611
        %v690 = vunpack.c.l.b16 %v612
        %v691 = vunpack.c.h.b16 %v612
        %v692 = vunpack.c.l.b16 %v613
        %v693 = vunpack.c.h.b16 %v613
        %v694 = vunpack.c.l.b16 %v614
        %v695 = vunpack.c.h.b16 %v614
        %v696 = vunpack.c.l.b16 %v615
        %v697 = vunpack.c.h.b16 %v615
        %v698 = vunpack.c.l.b16 %v616
        %v699 = vunpack.c.h.b16 %v616
        %v700 = vunpack.c.l.b16 %v617
        %v701 = vunpack.c.h.b16 %v617
        %v702 = vunpack.c.l.b16 %v618
        %v703 = vunpack.c.h.b16 %v618
        %v704 = vunpack.c.l.b16 %v619
        %v705 = vunpack.c.h.b16 %v619
        %v706 = vunpack.c.l.b16 %v620
        %v707 = vunpack.c.h.b16 %v620
        %v708 = vunpack.c.l.b16 %v621
        %v709 = vunpack.c.h.b16 %v621
        %v710 = vunpack.c.l.b16 %v622
        %v711 = vunpack.c.h.b16 %v622
        %v712 = vunpack.c.l.b16 %v623
        %v713 = vunpack.c.h.b16 %v623
        %v714 = vunpack.c.l.b16 %v624
        %v715 = vunpack.c.h.b16 %v624
        %v716 = vunpack.c.l.b16 %v625
        %v717 = vunpack.c.h.b16 %v625
        %v718 = vunpack.c.l.b16 %v626
        %v719 = vunpack.c.h.b16 %v626
        %v720 = vunpack.c.l.b16 %v627
        %v721 = vunpack.c.h.b16 %v627
        %v722 = vunpack.c.l.b16 %v628
        %v723 = vunpack.c.h.b16 %v628
        %v724 = vunpack.c.l.b16 %v629
        %v725 = vunpack.c.h.b16 %v629
        %v726 = vunpack.c.l.b16 %v630
        %v727 = vunpack.c.h.b16 %v630
        %v728 = vunpack.c.l.b16 %v631
        %v729 = vunpack.c.h.b16 %v631
        %v730 = vunpack.c.l.b16 %v632
        %v731 = vunpack.c.h.b16 %v632
        %v732 = vunpack.c.l.b16 %v633
        %v733 = vunpack.c.h.b16 %v633
        %v734 = vunpack.c.l.b16 %v634
        %v735 = vunpack.c.h.b16 %v634
        %v736 = vunpack.c.l.b16 %v635
        %v737 = vunpack.c.h.b16 %v635
        %v738 = vunpack.c.l.b16 %v636
        %v739 = vunpack.c.h.b16 %v636
        %v740 = vunpack.c.l.b16 %v637
        %v741 = vunpack.c.h.b16 %v637
        %v742 = vunpack.c.l.b16 %v638
        %v743 = vunpack.c.h.b16 %v638
        %v744 = vunpack.c.l.b16 %v639
        %v745 = vunpack.c.h.b16 %v639
        %v746 = vunpack.c.l.b16 %v640
        %v747 = vunpack.c.h.b16 %v640
        %v748 = vunpack.c.l.b16 %v641
        %v749 = vunpack.c.h.b16 %v641
        %v750 = vpack.c.b16 %v688, %v686
        %v751 = vpack.c.b16 %v689, %v687
        %v752 = vpack.c.b16 %v692, %v690
        %v753 = vpack.c.b16 %v693, %v691
        %v754 = vpack.c.b16 %v696, %v694
        %v755 = vpack.c.b16 %v697, %v695
        %v756 = vpack.c.b16 %v700, %v698
        %v757 = vpack.c.b16 %v701, %v699
        %v758 = vpack.c.b16 %v704, %v702
        %v759 = vpack.c.b16 %v705, %v703
        %v760 = vpack.c.b16 %v708, %v706
        %v761 = vpack.c.b16 %v709, %v707
        %v762 = vpack.c.b16 %v712, %v710
        %v763 = vpack.c.b16 %v713, %v711
        %v764 = vpack.c.b16 %v716, %v714
        %v765 = vpack.c.b16 %v717, %v715
        %v766 = vpack.c.b16 %v720, %v718
        %v767 = vpack.c.b16 %v721, %v719
        %v768 = vpack.c.b16 %v724, %v722
        %v769 = vpack.c.b16 %v725, %v723
        %v770 = vpack.c.b16 %v728, %v726
        %v771 = vpack.c.b16 %v729, %v727
        %v772 = vpack.c.b16 %v732, %v730
        %v773 = vpack.c.b16 %v733, %v731
        %v774 = vpack.c.b16 %v736, %v734
        %v775 = vpack.c.b16 %v737, %v735
        %v776 = vpack.c.b16 %v740, %v738
        %v777 = vpack.c.b16 %v741, %v739
        %v778 = vpack.c.b16 %v744, %v742
        %v779 = vpack.c.b16 %v745, %v743
        %v780 = vpack.c.b16 %v748, %v746
        %v781 = vpack.c.b16 %v749, %v747
        %814 = vmatprep.subr.bf16.mxu0 %v751
        %815 = vmatpush1.bf16.msra.mxu0 %v750
        %816 = vmatprep.subr.bf16.mxu0 %v753
        %817 = vmatpush1.bf16.msra.mxu0 %v752
        %818 = vmatprep.subr.bf16.mxu0 %v755
        %819 = vmatpush1.bf16.msra.mxu0 %v754
        %820 = vmatprep.subr.bf16.mxu0 %v757
        %821 = vmatpush1.bf16.msra.mxu0 %v756
        %822 = vmatprep.subr.bf16.mxu0 %v759
        %823 = vmatpush1.bf16.msra.mxu0 %v758
        %824 = vmatprep.subr.bf16.mxu0 %v761
        %825 = vmatpush1.bf16.msra.mxu0 %v760
        %826 = vmatprep.subr.bf16.mxu0 %v763
        %827 = vmatpush1.bf16.msra.mxu0 %v762
        %828 = vmatprep.subr.bf16.mxu0 %v765
        %829 = vmatpush1.bf16.msra.mxu0 %v764
        %830 = vmatprep.subr.bf16.mxu0 %v767
        %831 = vmatpush1.bf16.msra.mxu0 %v766
        %832 = vmatprep.subr.bf16.mxu0 %v769
        %833 = vmatpush1.bf16.msra.mxu0 %v768
        %834 = vmatprep.subr.bf16.mxu0 %v771
        %835 = vmatpush1.bf16.msra.mxu0 %v770
        %836 = vmatprep.subr.bf16.mxu0 %v773
        %837 = vmatpush1.bf16.msra.mxu0 %v772
        %838 = vmatprep.subr.bf16.mxu0 %v775
        %839 = vmatpush1.bf16.msra.mxu0 %v774
        %840 = vmatprep.subr.bf16.mxu0 %v777
        %841 = vmatpush1.bf16.msra.mxu0 %v776
        %842 = vmatprep.subr.bf16.mxu0 %v779
        %843 = vmatpush1.bf16.msra.mxu0 %v778
        %844 = vmatprep.subr.bf16.mxu0 %v781
        %845 = vmatpush1.bf16.msra.mxu0 %v780
        %846 = vmatprep.mubr.bf16.mxu0 %v609
        %847 = vmatmul.mubr.bf16.gmra.mrb[0].mxu0 %v608
        %v848 = vpop.f32.mrb[0].mxu0
        %v849 = vadd.f32 %v647, %v848
        %v850 = vpop.f32.mrb[0].mxu0
        %v851 = vadd.f32 %v651, %v850
        %v852 = vpop.f32.mrb[0].mxu0
        %v853 = vadd.f32 %v647, %v852
        %v854 = vpop.f32.mrb[0].mxu0
        %v855 = vadd.f32 %v651, %v854
        %856 = vdwg.mxu0
        %v857 = vmax.f32 %v849, 0.0
        %v858 = vmax.f32 %v851, 0.0
        %v859 = vmax.f32 %v853, 0.0
        %v860 = vmax.f32 %v855, 0.0
        %v861 = vpack.c.bf16 %v859, %v857
        %v862 = vpack.c.bf16 %v860, %v858
        %v863 = vld [vmem:[#allocation8] sm:$0xf]
        %v864 = vld [vmem:[#allocation8 + $0x4] sm:$0xf]
        %v865 = vld [vmem:[#allocation8 + $0x8] sm:$0xf]
        %v866 = vld [vmem:[#allocation8 + $0xc] sm:$0xf]
        %v867 = vld [vmem:[#allocation8 + $0x10] sm:$0xf]
        %v868 = vld [vmem:[#allocation8 + $0x14] sm:$0xf]
        %v869 = vld [vmem:[#allocation8 + $0x18] sm:$0xf]
        %v870 = vld [vmem:[#allocation8 + $0x1c] sm:$0xf]
        %v871 = vld [vmem:[#allocation8 + $0x20] sm:$0xf]
        %v872 = vld [vmem:[#allocation8 + $0x24] sm:$0xf]
        %v873 = vld [vmem:[#allocation8 + $0x28] sm:$0xf]
        %v874 = vld [vmem:[#allocation8 + $0x2c] sm:$0xf]
        %v875 = vld [vmem:[#allocation8 + $0x30] sm:$0xf]
        %v876 = vld [vmem:[#allocation8 + $0x34] sm:$0xf]
        %v877 = vld [vmem:[#allocation8 + $0x38] sm:$0xf]
        %v878 = vld [vmem:[#allocation8 + $0x3c] sm:$0xf]
        %v879 = vld [vmem:[#allocation8 + $0x40] sm:$0xf]
        %v880 = vld [vmem:[#allocation8 + $0x44] sm:$0xf]
        %v881 = vld [vmem:[#allocation8 + $0x48] sm:$0xf]
        %v882 = vld [vmem:[#allocation8 + $0x4c] sm:$0xf]
        %v883 = vld [vmem:[#allocation8 + $0x50] sm:$0xf]
        %v884 = vld [vmem:[#allocation8 + $0x54] sm:$0xf]
        %v885 = vld [vmem:[#allocation8 + $0x58] sm:$0xf]
        %v886 = vld [vmem:[#allocation8 + $0x5c] sm:$0xf]
        %v887 = vld [vmem:[#allocation8 + $0x60] sm:$0xf]
        %v888 = vld [vmem:[#allocation8 + $0x64] sm:$0xf]
        %v889 = vld [vmem:[#allocation8 + $0x68] sm:$0xf]
        %v890 = vld [vmem:[#allocation8 + $0x6c] sm:$0xf]
        %v891 = vld [vmem:[#allocation8 + $0x70] sm:$0xf]
        %v892 = vld [vmem:[#allocation8 + $0x74] sm:$0xf]
        %v893 = vld [vmem:[#allocation8 + $0x78] sm:$0xf]
        %v894 = vld [vmem:[#allocation8 + $0x7c] sm:$0xf]
        %v895 = vld [vmem:[%s6] sm:$0x1]
        %v897 = vlaneseq
        %v898 = vshrl.u32 %v897, 7
        %v899 = vsub.s32 0, %v898
        %v900 = vrot.slane %v895, %v899
        %v934 = vunpack.c.l.b16 %v863
        %v935 = vunpack.c.l.b16 %v864
        %v936 = vunpack.c.l.b16 %v865
        %v937 = vunpack.c.l.b16 %v866
        %v938 = vunpack.c.l.b16 %v867
        %v939 = vunpack.c.l.b16 %v868
        %v940 = vunpack.c.l.b16 %v869
        %v941 = vunpack.c.l.b16 %v870
        %v942 = vunpack.c.l.b16 %v871
        %v943 = vunpack.c.l.b16 %v872
        %v944 = vunpack.c.l.b16 %v873
        %v945 = vunpack.c.l.b16 %v874
        %v946 = vunpack.c.l.b16 %v875
        %v947 = vunpack.c.l.b16 %v876
        %v948 = vunpack.c.l.b16 %v877
        %v949 = vunpack.c.l.b16 %v878
        %v950 = vunpack.c.l.b16 %v879
        %v951 = vunpack.c.l.b16 %v880
        %v952 = vunpack.c.l.b16 %v881
        %v953 = vunpack.c.l.b16 %v882
        %v954 = vunpack.c.l.b16 %v883
        %v955 = vunpack.c.l.b16 %v884
        %v956 = vunpack.c.l.b16 %v885
        %v957 = vunpack.c.l.b16 %v886
        %v958 = vunpack.c.l.b16 %v887
        %v959 = vunpack.c.l.b16 %v888
        %v960 = vunpack.c.l.b16 %v889
        %v961 = vunpack.c.l.b16 %v890
        %v962 = vunpack.c.l.b16 %v891
        %v963 = vunpack.c.l.b16 %v892
        %v964 = vunpack.c.l.b16 %v893
        %v965 = vunpack.c.l.b16 %v894
        %v966 = vpack.c.b16 %v935, %v934
        %v967 = vpack.c.b16 %v937, %v936
        %v968 = vpack.c.b16 %v939, %v938
        %v969 = vpack.c.b16 %v941, %v940
        %v970 = vpack.c.b16 %v943, %v942
        %v971 = vpack.c.b16 %v945, %v944
        %v972 = vpack.c.b16 %v947, %v946
        %v973 = vpack.c.b16 %v949, %v948
        %v974 = vpack.c.b16 %v951, %v950
        %v975 = vpack.c.b16 %v953, %v952
        %v976 = vpack.c.b16 %v955, %v954
        %v977 = vpack.c.b16 %v957, %v956
        %v978 = vpack.c.b16 %v959, %v958
        %v979 = vpack.c.b16 %v961, %v960
        %v980 = vpack.c.b16 %v963, %v962
        %v981 = vpack.c.b16 %v965, %v964
        %998 = vmatprep.subr.bf16.mxu0 0
        %999 = vmatpush1.bf16.msra.mxu0 %v966
        %1000 = vmatprep.subr.bf16.mxu0 0
        %1001 = vmatpush1.bf16.msra.mxu0 %v967
        %1002 = vmatprep.subr.bf16.mxu0 0
        %1003 = vmatpush1.bf16.msra.mxu0 %v968
        %1004 = vmatprep.subr.bf16.mxu0 0
        %1005 = vmatpush1.bf16.msra.mxu0 %v969
        %1006 = vmatprep.subr.bf16.mxu0 0
        %1007 = vmatpush1.bf16.msra.mxu0 %v970
        %1008 = vmatprep.subr.bf16.mxu0 0
        %1009 = vmatpush1.bf16.msra.mxu0 %v971
        %1010 = vmatprep.subr.bf16.mxu0 0
        %1011 = vmatpush1.bf16.msra.mxu0 %v972
        %1012 = vmatprep.subr.bf16.mxu0 0
        %1013 = vmatpush1.bf16.msra.mxu0 %v973
        %1014 = vmatprep.subr.bf16.mxu0 0
        %1015 = vmatpush1.bf16.msra.mxu0 %v974
        %1016 = vmatprep.subr.bf16.mxu0 0
        %1017 = vmatpush1.bf16.msra.mxu0 %v975
        %1018 = vmatprep.subr.bf16.mxu0 0
        %1019 = vmatpush1.bf16.msra.mxu0 %v976
        %1020 = vmatprep.subr.bf16.mxu0 0
        %1021 = vmatpush1.bf16.msra.mxu0 %v977
        %1022 = vmatprep.subr.bf16.mxu0 0
        %1023 = vmatpush1.bf16.msra.mxu0 %v978
        %1024 = vmatprep.subr.bf16.mxu0 0
        %1025 = vmatpush1.bf16.msra.mxu0 %v979
        %1026 = vmatprep.subr.bf16.mxu0 0
        %1027 = vmatpush1.bf16.msra.mxu0 %v980
        %1028 = vmatprep.subr.bf16.mxu0 0
        %1029 = vmatpush1.bf16.msra.mxu0 %v981
        %1030 = vmatprep.mubr.bf16.mxu0 %v862
        %1031 = vmatmul.mubr.bf16.gmra.mrb[0].mxu0 %v861
        %v1032 = vpop.f32.mrb[0].mxu0
        %v1033 = vadd.f32 %v900, %v1032
        %v1034 = vpop.f32.mrb[0].mxu0
        %v1035 = vpop.f32.mrb[0].mxu0
        %v1036 = vadd.f32 %v900, %v1035
        %v1037 = vpop.f32.mrb[0].mxu0
        %1038 = vdwg.mxu0
        %v1039 = vmul.f32 %v1033, 0.5
        %v1040 = vmul.f32 %v1036, 0.5
        %v1041 = vtanh.pop %v1039
        %v1042 = vtanh.pop %v1040
        %v1043 = vadd.f32 %v1041, 1.0
        %v1044 = vadd.f32 %v1042, 1.0
        %v1045 = vmul.f32 %v1043, 0.5
        %v1046 = vmul.f32 %v1044, 0.5
        %1047 = vst [vmem:[%s341] sm:$0xff] %v1045
        %1048 = vst [vmem:[%s341 + $0x8] sm:$0xff] %v1046
        %s1049 = sand.u32 %s186, 1
        %s1050 = scalar_lea.sflag [#allocation4], %s1049
        %s1051 = sand.u32 %s186, 1
        %s1052 = smul.addr %s1051, 16
        %s1053 = scalar_lea.vmem [#allocation10], %s1052
        // Predicated region
        $region65: #{tpu_custom_call.1} parent=47 // pred_check
          %p1054 = pneg %p196
        $region66: #{tpu_custom_call.1} parent=47 // pred_check_branch
          %1056 = sbr.rel (%p1054) target = $region68
        $region67: #{tpu_custom_call.1} parent=47 // pred_region
          %s1057 = smul.u32 2, %s26
          %s1059 = ssub.s32 256, 256
          %1060 = vsyncadd %s1050, %s1059
          %s1061 = smul.addr %s1057, 128
          %s1062 = scalar_lea.hbm %s7, %s1061
          %s1063 = sshll.u32 %s1053, 4
          %s1064 = int_to_ptr.vmem [resolvable:$true] %s1063
          %1069 = dma.vmem_to_hbm [thread:$0]  %s1064, 256, %s1062, %s1050, 128, 128, 8
        $region68: #{tpu_custom_call.1} parent=47 // pred_fallthru
          _
      $region48: #{tpu_custom_call.1} parent=5 // pred_fallthru
        _
      %p1070 = scmp.le.s32.totalorder 2, %s21
      // Predicated region
      $region69: #{tpu_custom_call.1} parent=5 // pred_check
        %p1071 = pneg %p1070
      $region70: #{tpu_custom_call.1} parent=5 // pred_check_branch
        %1073 = sbr.rel (%p1071) target = $region72
      $region71: #{tpu_custom_call.1} parent=5 // pred_region
        %s1074 = ssub.s32 %s21, 2
        // Predicated region
        $region73: #{tpu_custom_call.1} parent=71 // pred_check
          %p1075 = pneg %p202
        $region74: #{tpu_custom_call.1} parent=71 // pred_check_branch
          %1077 = sbr.rel (%p1075) target = $region76
        $region75: #{tpu_custom_call.1} parent=71 // pred_region
          %s1078 = sand.u32 %s187, 1
          %s1079 = scalar_lea.sflag [#allocation4], %s1078
          %s1080 = sand.u32 %s187, 1
          %s1081 = smul.addr %s1080, 16
          %s1082 = scalar_lea.vmem [#allocation10], %s1081
          %1083 = dma.done %s1079, 256
        $region76: #{tpu_custom_call.1} parent=71 // pred_fallthru
          _
      $region72: #{tpu_custom_call.1} parent=5 // pred_fallthru
        _
    $region6: #{tpu_custom_call.1} parent=1 // loop_footer
      %s25 = sadd.s32 1, %s21
    $region7: #{tpu_custom_call.1} parent=1 // loop_footer_branch
      %20 = sbr.rel target = $region3
    $region8: #{tpu_custom_call.1} parent=1 // loop_exit
      _
    %1084 = vsyncpa [#allocation3], 1
    %s1085 = scalar_lea.sflag [#allocation3], 1
    %1086 = vsyncpa %s1085, 1
    %1087 = vsyncpa [#allocation6], 1
    %1088 = vsyncpa [#allocation9], 1
    %1089 = vsyncpa [#allocation4], 1
    %s1090 = scalar_lea.sflag [#allocation4], 1
    %1091 = vsyncpa %s1090, 1

</llo_original>
